<compile_context>
chip_gen: v5e
topology: v5e:2x2
jax: 0.10.0
libtpu: 0.0.40
codegen_flags: <defaults>
</compile_context>

<pallas_src>
import math

import jax
import jax.numpy as jnp
from jax.experimental import pallas as pl
from jax.experimental.pallas import tpu as pltpu

INPUT_FEATURES = 21
WINDOW_SIZE = 10
N_IN = INPUT_FEATURES * WINDOW_SIZE      # 210
H1 = 256
H2 = 564
H2_PAD = 640                             # 564 padded up to a multiple of 128
H3 = 128
N_OUT = 12
N_OUT_PAD = 128                          # lane-dense output block

_MEGACORE_MIN_ROWS = 512                 # below this, splitting across TCs is not worth it


def _round_up(n, m):
    return ((n + m - 1) // m) * m


def _cdiv(a, b):
    return (a + b - 1) // b


# ----------------------------------------------------------------------------
# Kernel
# ----------------------------------------------------------------------------
def _mlp_kernel(x_ref,
                w1_ref, b1_ref,
                w2_ref, b2_ref,
                w3_ref, b3_ref,
                w4_ref, b4_ref,
                o_ref):
    w1 = w1_ref[...]
    cdt = w1.dtype                        # matmul operand dtype (bf16 or f32)

    x = x_ref[...].astype(cdt)

    # f32 accumulate on the MXU; ReLU after the cast to the operand dtype so
    # the max runs on packed bf16 vregs (exact: cast preserves sign and zero).
    h = jnp.dot(x, w1, preferred_element_type=jnp.float32) + b1_ref[...]
    h = jnp.maximum(h.astype(cdt), 0.0)

    h = jnp.dot(h, w2_ref[...], preferred_element_type=jnp.float32) + b2_ref[...]
    h = jnp.maximum(h.astype(cdt), 0.0)

    h = jnp.dot(h, w3_ref[...], preferred_element_type=jnp.float32) + b3_ref[...]
    h = jnp.maximum(h.astype(cdt), 0.0)

    y = jnp.dot(h, w4_ref[...], preferred_element_type=jnp.float32) + b4_ref[...]
    o_ref[...] = y.astype(o_ref.dtype)


# ----------------------------------------------------------------------------
# Wrapper
# ----------------------------------------------------------------------------
def _pick_batch_tile(B, batch_tile):
    """Pick a batch tile (multiple of 8) and the resulting grid size.

    For B >= _MEGACORE_MIN_ROWS the tile is capped so the grid has at least 2
    (and an even number of) steps, so ("parallel",) can shard the batch across
    v7x's two TensorCores.  For small B the tile just covers the batch."""
    bt = min(batch_tile, _round_up(B, 8))
    if B >= _MEGACORE_MIN_ROWS:
        bt = min(bt, _round_up(_cdiv(B, 2), 8))
    bt = max(8, _round_up(bt, 8))
    steps = _cdiv(B, bt)
    if B >= _MEGACORE_MIN_ROWS and steps > 1 and steps % 2 == 1:
        steps += 1
        bt = max(8, _round_up(_cdiv(B, steps), 8))
        steps = _cdiv(B, bt)
    return bt, steps


def _const_spec(arr):
    """Whole-array block, constant across the grid (weights stay resident).

    Single-buffered: the block never changes, so 2-deep pipelining would only
    double its VMEM footprint."""
    idx_map = (lambda i, _n=arr.ndim: (0,) * _n)
    if hasattr(pl, "Buffered"):
        try:
            return pl.BlockSpec(arr.shape, idx_map, pipeline_mode=pl.Buffered(1))
        except TypeError:
            pass
    return pl.BlockSpec(arr.shape, idx_map)


def mlp_forward(x, packed_params, *, batch_tile=2048, out_dtype=None,
                return_padded=False):
    """x: (B, 210) -> (B, 12) (or (B, 128) padded if return_padded=True).

    packed_params: output of pack_params() (padded, lane-dense weights).
    x may be f32 or bf16; out_dtype defaults to x.dtype.  No batch padding is
    done in the wrapper — the ragged last tile is handled in-kernel via
    Pallas' partial-block masking."""
    (w1, b1), (w2, b2), (w3, b3), (w4, b4) = packed_params
    B = x.shape[0]
    out_dtype = x.dtype if out_dtype is None else out_dtype

    bt, steps = _pick_batch_tile(B, batch_tile)
    grid = (steps,)

    weight_bytes = sum(int(a.size) * a.dtype.itemsize
                       for a in (w1, b1, w2, b2, w3, b3, w4, b4))
    rows = steps * bt
    flops = 2 * rows * (N_IN * H1 + H1 * H2_PAD + H2_PAD * H3 + H3 * N_OUT_PAD)
    bytes_accessed = (B * N_IN * x.dtype.itemsize
                      + B * N_OUT_PAD * jnp.dtype(out_dtype).itemsize
                      + weight_bytes)

    cp_kwargs = dict(dimension_semantics=("parallel",))
    if bt > 2048:
        # Larger tiles (v5e/v6e only; 128 MiB physical VMEM) need a raised
        # scoped-VMEM limit.  Keep bt <= 2048 on v7x (64 MiB physical VMEM).
        cp_kwargs["vmem_limit_bytes"] = 100 * 1024 * 1024

    out = pl.pallas_call(
        _mlp_kernel,
        out_shape=jax.ShapeDtypeStruct((B, N_OUT_PAD), out_dtype),
        grid_spec=pltpu.PrefetchScalarGridSpec(
            num_scalar_prefetch=0,
            grid=grid,
            in_specs=[
                pl.BlockSpec((bt, N_IN), lambda i: (i, 0)),
                _const_spec(w1), _const_spec(b1),
                _const_spec(w2), _const_spec(b2),
                _const_spec(w3), _const_spec(b3),
                _const_spec(w4), _const_spec(b4),
            ],
            out_specs=pl.BlockSpec((bt, N_OUT_PAD), lambda i: (i, 0)),
        ),
        compiler_params=pltpu.CompilerParams(**cp_kwargs),
        cost_estimate=pl.CostEstimate(
            flops=flops, transcendentals=0, bytes_accessed=bytes_accessed),
    )(x, w1, b1, w2, b2, w3, b3, w4, b4)

    if return_padded:
        return out                       # (B, 128); consumer slices/ignores cols 12..127
    return out[:, :N_OUT]


# ----------------------------------------------------------------------------
# Parameters
# ----------------------------------------------------------------------------
def init_params(key):
    """PyTorch-style nn.Linear init: U(-1/sqrt(fan_in), +1/sqrt(fan_in)).

    Returns logical (unpadded, f32) params with weights stored as (in, out)."""
    dims = [(N_IN, H1), (H1, H2), (H2, H3), (H3, N_OUT)]
    params = []
    for fan_in, fan_out in dims:
        key, kw, kb = jax.random.split(key, 3)
        bound = 1.0 / math.sqrt(fan_in)
        w = jax.random.uniform(kw, (fan_in, fan_out), jnp.float32, -bound, bound)
        b = jax.random.uniform(kb, (fan_out,), jnp.float32, -bound, bound)
        params.append((w, b))
    return params


def pack_params(params, param_dtype=jnp.bfloat16):
    """Pad H2 -> 640 and N_OUT -> 128 with zeros (numerically exact: ReLU(0)=0,
    padded output cols are discarded), cast weights to `param_dtype`, keep
    biases in f32 shaped (1, out) for clean 2-D broadcast in-kernel."""
    (w1, b1), (w2, b2), (w3, b3), (w4, b4) = params

    w2p = jnp.pad(w2, ((0, 0), (0, H2_PAD - H2)))
    b2p = jnp.pad(b2, (0, H2_PAD - H2))
    w3p = jnp.pad(w3, ((0, H2_PAD - H2), (0, 0)))       # b3 is already 128 wide
    w4p = jnp.pad(w4, ((0, 0), (0, N_OUT_PAD - N_OUT)))
    b4p = jnp.pad(b4, (0, N_OUT_PAD - N_OUT))

    def prep(w, b):
        return w.astype(param_dtype), b.astype(jnp.float32).reshape(1, -1)

    return (prep(w1, b1), prep(w2p, b2p), prep(w3p, b3), prep(w4p, b4p))


# ----------------------------------------------------------------------------
# References
# ----------------------------------------------------------------------------
def mlp_reference_packed(x, packed_params):
    """Same quantization policy as the kernel (bf16 operands, f32 accum)."""
    h = x
    for idx, (w, b) in enumerate(packed_params):
        h = jnp.dot(h.astype(w.dtype), w,
                    preferred_element_type=jnp.float32) + b
        if idx < len(packed_params) - 1:
            h = jnp.maximum(h, 0.0)
    return h[:, :N_OUT]


def mlp_reference_f32(x, params):
    """Plain f32 forward matching the PyTorch module exactly."""
    h = x
    for idx, (w, b) in enumerate(params):
        h = h @ w + b
        if idx < len(params) - 1:
            h = jnp.maximum(h, 0.0)
    return h


# ----------------------------------------------------------------------------
# Main
# ----------------------------------------------------------------------------
if __name__ == "__main__":
    key = jax.random.PRNGKey(0)
    kx, kp = jax.random.split(key)

    params = init_params(kp)
    packed = pack_params(params, param_dtype=jnp.bfloat16)

    # Small batch, deliberately not a multiple of the tile: 4 grid steps of 16
    # rows, ragged last block (2 valid rows) -> exercises the masked tail path.
    batch = 50
    x = jax.random.normal(kx, (batch, N_IN), jnp.float32)
    out = jax.block_until_ready(mlp_forward(x, packed, batch_tile=16))
    assert out.shape == (batch, N_OUT)

    # Tight check vs a reference using the identical bf16/f32-accum policy.
    ref_q = mlp_reference_packed(x, packed)
    assert jnp.allclose(out, ref_q, atol=2e-3, rtol=2e-3), \
        "mismatch vs matched-precision reference"

    # Loose check vs the pure-f32 PyTorch-equivalent forward (bf16 drift only).
    ref_f32 = mlp_reference_f32(x, params)
    assert jnp.allclose(out, ref_f32, atol=5e-2, rtol=5e-2), \
        "mismatch vs f32 reference"

    # A batch above the megacore threshold: picks an even 2-step grid
    # (bt=304) so both v7x TensorCores would each get a tile.
    batch2 = 600
    x2 = jax.random.normal(kx, (batch2, N_IN), jnp.float32)
    out2 = jax.block_until_ready(mlp_forward(x2, packed))
    assert out2.shape == (batch2, N_OUT)
    assert jnp.allclose(out2, mlp_reference_packed(x2, packed),
                        atol=2e-3, rtol=2e-3), "mismatch on megacore path"

    print("KERNEL_OK")
</pallas_src>

<mosaic_0001>
module attributes {stable_mosaic.version = 11 : i64} {
  func.func @_mlp_kernel(%arg0: i32, %arg1: memref<16x210xf32, #tpu.memory_space<vmem>>, %arg2: memref<210x256xbf16, #tpu.memory_space<vmem>>, %arg3: memref<1x256xf32, #tpu.memory_space<vmem>>, %arg4: memref<256x640xbf16, #tpu.memory_space<vmem>>, %arg5: memref<1x640xf32, #tpu.memory_space<vmem>>, %arg6: memref<640x128xbf16, #tpu.memory_space<vmem>>, %arg7: memref<1x128xf32, #tpu.memory_space<vmem>>, %arg8: memref<128x128xbf16, #tpu.memory_space<vmem>>, %arg9: memref<1x128xf32, #tpu.memory_space<vmem>>, %arg10: memref<16x128xf32, #tpu.memory_space<vmem>>) attributes {dimension_semantics = [#tpu.dimension_semantics<parallel>], iteration_bounds = array<i64: 4>, scalar_prefetch = 0 : i64, scratch_operands = 0 : i64, tpu.core_type = #tpu.core_type<tc>, window_params = [{transform_indices = @transform_0, window_bounds = array<i64: 16, 210>}, {pipeline_mode = #tpu.pipeline_mode<synchronous>, transform_indices = @transform_1, window_bounds = array<i64: 210, 256>}, {pipeline_mode = #tpu.pipeline_mode<synchronous>, transform_indices = @transform_2, window_bounds = array<i64: 1, 256>}, {pipeline_mode = #tpu.pipeline_mode<synchronous>, transform_indices = @transform_3, window_bounds = array<i64: 256, 640>}, {pipeline_mode = #tpu.pipeline_mode<synchronous>, transform_indices = @transform_4, window_bounds = array<i64: 1, 640>}, {pipeline_mode = #tpu.pipeline_mode<synchronous>, transform_indices = @transform_5, window_bounds = array<i64: 640, 128>}, {pipeline_mode = #tpu.pipeline_mode<synchronous>, transform_indices = @transform_6, window_bounds = array<i64: 1, 128>}, {pipeline_mode = #tpu.pipeline_mode<synchronous>, transform_indices = @transform_7, window_bounds = array<i64: 128, 128>}, {pipeline_mode = #tpu.pipeline_mode<synchronous>, transform_indices = @transform_8, window_bounds = array<i64: 1, 128>}, {transform_indices = @transform_9, window_bounds = array<i64: 16, 128>}]} {
    %c0 = arith.constant 0 : index
    %c0_0 = arith.constant 0 : index
    %0 = vector.load %arg2[%c0, %c0_0] : memref<210x256xbf16, #tpu.memory_space<vmem>>, vector<210x256xbf16>
    %c0_1 = arith.constant 0 : index
    %c0_2 = arith.constant 0 : index
    %1 = vector.load %arg1[%c0_1, %c0_2] : memref<16x210xf32, #tpu.memory_space<vmem>>, vector<16x210xf32>
    %2 = arith.truncf %1 : vector<16x210xf32> to vector<16x210xbf16>
    %cst = arith.constant dense<0.000000e+00> : vector<16x256xf32>
    %3 = tpu.matmul %2, %0, %cst {dimension_numbers = #tpu.dot_dimension_numbers<[1], [0], [0], [1], [0, 0, 1, 1], [], []>} : vector<16x210xbf16>, vector<210x256xbf16>, vector<16x256xf32> -> vector<16x256xf32>
    %c0_3 = arith.constant 0 : index
    %c0_4 = arith.constant 0 : index
    %4 = vector.load %arg3[%c0_3, %c0_4] : memref<1x256xf32, #tpu.memory_space<vmem>>, vector<1x256xf32>
    %5 = vector.broadcast %4 : vector<1x256xf32> to vector<16x256xf32>
    %6 = arith.addf %3, %5 : vector<16x256xf32>
    %7 = arith.truncf %6 : vector<16x256xf32> to vector<16x256xbf16>
    %cst_5 = arith.constant 0.000000e+00 : bf16
    %8 = vector.broadcast %cst_5 : bf16 to vector<16x256xbf16>
    %9 = arith.maximumf %7, %8 : vector<16x256xbf16>
    %c0_6 = arith.constant 0 : index
    %c0_7 = arith.constant 0 : index
    %10 = vector.load %arg4[%c0_6, %c0_7] : memref<256x640xbf16, #tpu.memory_space<vmem>>, vector<256x640xbf16>
    %cst_8 = arith.constant dense<0.000000e+00> : vector<16x640xf32>
    %11 = tpu.matmul %9, %10, %cst_8 {dimension_numbers = #tpu.dot_dimension_numbers<[1], [0], [0], [1], [0, 0, 1, 1], [], []>} : vector<16x256xbf16>, vector<256x640xbf16>, vector<16x640xf32> -> vector<16x640xf32>
    %c0_9 = arith.constant 0 : index
    %c0_10 = arith.constant 0 : index
    %12 = vector.load %arg5[%c0_9, %c0_10] : memref<1x640xf32, #tpu.memory_space<vmem>>, vector<1x640xf32>
    %13 = vector.broadcast %12 : vector<1x640xf32> to vector<16x640xf32>
    %14 = arith.addf %11, %13 : vector<16x640xf32>
    %15 = arith.truncf %14 : vector<16x640xf32> to vector<16x640xbf16>
    %cst_11 = arith.constant 0.000000e+00 : bf16
    %16 = vector.broadcast %cst_11 : bf16 to vector<16x640xbf16>
    %17 = arith.maximumf %15, %16 : vector<16x640xbf16>
    %c0_12 = arith.constant 0 : index
    %c0_13 = arith.constant 0 : index
    %18 = vector.load %arg6[%c0_12, %c0_13] : memref<640x128xbf16, #tpu.memory_space<vmem>>, vector<640x128xbf16>
    %cst_14 = arith.constant dense<0.000000e+00> : vector<16x128xf32>
    %19 = tpu.matmul %17, %18, %cst_14 {dimension_numbers = #tpu.dot_dimension_numbers<[1], [0], [0], [1], [0, 0, 1, 1], [], []>} : vector<16x640xbf16>, vector<640x128xbf16>, vector<16x128xf32> -> vector<16x128xf32>
    %c0_15 = arith.constant 0 : index
    %c0_16 = arith.constant 0 : index
    %20 = vector.load %arg7[%c0_15, %c0_16] : memref<1x128xf32, #tpu.memory_space<vmem>>, vector<1x128xf32>
    %21 = vector.broadcast %20 : vector<1x128xf32> to vector<16x128xf32>
    %22 = arith.addf %19, %21 : vector<16x128xf32>
    %23 = arith.truncf %22 : vector<16x128xf32> to vector<16x128xbf16>
    %cst_17 = arith.constant 0.000000e+00 : bf16
    %24 = vector.broadcast %cst_17 : bf16 to vector<16x128xbf16>
    %25 = arith.maximumf %23, %24 : vector<16x128xbf16>
    %c0_18 = arith.constant 0 : index
    %c0_19 = arith.constant 0 : index
    %26 = vector.load %arg8[%c0_18, %c0_19] : memref<128x128xbf16, #tpu.memory_space<vmem>>, vector<128x128xbf16>
    %cst_20 = arith.constant dense<0.000000e+00> : vector<16x128xf32>
    %27 = tpu.matmul %25, %26, %cst_20 {dimension_numbers = #tpu.dot_dimension_numbers<[1], [0], [0], [1], [0, 0, 1, 1], [], []>} : vector<16x128xbf16>, vector<128x128xbf16>, vector<16x128xf32> -> vector<16x128xf32>
    %c0_21 = arith.constant 0 : index
    %c0_22 = arith.constant 0 : index
    %28 = vector.load %arg9[%c0_21, %c0_22] : memref<1x128xf32, #tpu.memory_space<vmem>>, vector<1x128xf32>
    %29 = vector.broadcast %28 : vector<1x128xf32> to vector<16x128xf32>
    %30 = arith.addf %27, %29 : vector<16x128xf32>
    %c0_23 = arith.constant 0 : index
    %c0_24 = arith.constant 0 : index
    %31 = vector.load %arg10[%c0_23, %c0_24] : memref<16x128xf32, #tpu.memory_space<vmem>>, vector<16x128xf32>
    tpu.vector_store %arg10[%c0_23, %c0_24], %30 {strides = array<i32>} : memref<16x128xf32, #tpu.memory_space<vmem>>, vector<16x128xf32>,
    return
  }
  func.func @transform_0(%arg0: i32) -> (i32, i32) {
    %c0_i32 = arith.constant 0 : i32
    %c0_i32_0 = arith.constant 0 : i32
    return %arg0, %c0_i32 : i32, i32
  }
  func.func @transform_1(%arg0: i32) -> (i32, i32) {
    %c0_i32 = arith.constant 0 : i32
    %c0_i32_0 = arith.constant 0 : i32
    %c0_i32_1 = arith.constant 0 : i32
    return %c0_i32, %c0_i32_0 : i32, i32
  }
  func.func @transform_2(%arg0: i32) -> (i32, i32) {
    %c0_i32 = arith.constant 0 : i32
    %c0_i32_0 = arith.constant 0 : i32
    %c0_i32_1 = arith.constant 0 : i32
    return %c0_i32, %c0_i32_0 : i32, i32
  }
  func.func @transform_3(%arg0: i32) -> (i32, i32) {
    %c0_i32 = arith.constant 0 : i32
    %c0_i32_0 = arith.constant 0 : i32
    %c0_i32_1 = arith.constant 0 : i32
    return %c0_i32, %c0_i32_0 : i32, i32
  }
  func.func @transform_4(%arg0: i32) -> (i32, i32) {
    %c0_i32 = arith.constant 0 : i32
    %c0_i32_0 = arith.constant 0 : i32
    %c0_i32_1 = arith.constant 0 : i32
    return %c0_i32, %c0_i32_0 : i32, i32
  }
  func.func @transform_5(%arg0: i32) -> (i32, i32) {
    %c0_i32 = arith.constant 0 : i32
    %c0_i32_0 = arith.constant 0 : i32
    %c0_i32_1 = arith.constant 0 : i32
    return %c0_i32, %c0_i32_0 : i32, i32
  }
  func.func @transform_6(%arg0: i32) -> (i32, i32) {
    %c0_i32 = arith.constant 0 : i32
    %c0_i32_0 = arith.constant 0 : i32
    %c0_i32_1 = arith.constant 0 : i32
    return %c0_i32, %c0_i32_0 : i32, i32
  }
  func.func @transform_7(%arg0: i32) -> (i32, i32) {
    %c0_i32 = arith.constant 0 : i32
    %c0_i32_0 = arith.constant 0 : i32
    %c0_i32_1 = arith.constant 0 : i32
    return %c0_i32, %c0_i32_0 : i32, i32
  }
  func.func @transform_8(%arg0: i32) -> (i32, i32) {
    %c0_i32 = arith.constant 0 : i32
    %c0_i32_0 = arith.constant 0 : i32
    %c0_i32_1 = arith.constant 0 : i32
    return %c0_i32, %c0_i32_0 : i32, i32
  }
  func.func @transform_9(%arg0: i32) -> (i32, i32) {
    %c0_i32 = arith.constant 0 : i32
    %c0_i32_0 = arith.constant 0 : i32
    return %arg0, %c0_i32 : i32, i32
  }
}

</mosaic_0001>

<llo_original>
// kernel: tpu_custom_call.1
$region0: #{tpu_custom_call.1}
  #allocation0 [shape = 'u32[]', space=smem, size = 0x4, offset = 0x4, fixed_abs, tag = 'smem constant byte address 0x4 - core index']
  #allocation1 [shape = 'u32[72,128]{1,0:T(1,128)}', space=vmem, size = 0x9000, scoped, tag = 'internal scratch']
  %s0 = inlined_call_operand.hbm [shape: f32[50,210], index: 0, kind: input, shape index: {}]
  %s1 = inlined_call_operand.hbm [shape: bf16[210,256], index: 1, kind: input, shape index: {}]
  %s2 = inlined_call_operand.hbm [shape: f32[1,256], index: 2, kind: input, shape index: {}]
  %s3 = inlined_call_operand.hbm [shape: bf16[256,640], index: 3, kind: input, shape index: {}]
  %s4 = inlined_call_operand.hbm [shape: f32[1,640], index: 4, kind: input, shape index: {}]
  %s5 = inlined_call_operand.hbm [shape: bf16[640,128], index: 5, kind: input, shape index: {}]
  %s6 = inlined_call_operand.vmem [shape: f32[1,128], index: 6, kind: input, shape index: {}]
  %s7 = inlined_call_operand.hbm [shape: bf16[128,128], index: 7, kind: input, shape index: {}]
  %s8 = inlined_call_operand.vmem [shape: f32[1,128], index: 8, kind: input, shape index: {}]
  %s9 = inlined_call_operand.hbm [shape: f32[50,128], index: 9, kind: output, shape index: {}]
  %s10 = sld [smem:[#allocation0]]
  $region97: #{tpu_custom_call.1} parent=0
    _
  %s12 = ssub.s32 1, %s10
  %s13 = scalar_select 0, %s12, %s10
  $region1: #{tpu_custom_call.1} parent=0
    #allocation2 [shape = 'u8[32768]{0}', space=vmem, size = 0x8000, scoped, tag = 'input window, operand 0']
    #allocation3 [shape = 's32[2]{0}', space=sflag, size = 0x8, scoped, tag = 'scoped memory for tpu_custom_call.1']
    #allocation4 [shape = 's32[2]{0}', space=sflag, size = 0x8, scoped, tag = 'scoped memory for tpu_custom_call.1']
    #allocation5 [shape = 'u8[110592]{0}', space=vmem, size = 0x1b000, scoped, tag = 'input window, operand 1, single buffered']
    #allocation6 [shape = 's32[1]{0}', space=sflag, size = 0x4, scoped, tag = 'scoped memory for tpu_custom_call.1']
    #allocation7 [shape = 'u8[1024]{0}', space=vmem, size = 0x400, scoped, tag = 'input window, operand 2, single buffered']
    #allocation8 [shape = 'u8[327680]{0}', space=vmem, size = 0x50000, scoped, tag = 'input window, operand 3, single buffered']
    #allocation9 [shape = 's32[1]{0}', space=sflag, size = 0x4, scoped, tag = 'scoped memory for tpu_custom_call.1']
    #allocation10 [shape = 'u8[2560]{0}', space=vmem, size = 0xc00, scoped, tag = 'input window, operand 4, single buffered']
    #allocation11 [shape = 'u8[163840]{0}', space=vmem, size = 0x28000, scoped, tag = 'input window, operand 5, single buffered']
    #allocation12 [shape = 's32[1]{0}', space=sflag, size = 0x4, scoped, tag = 'scoped memory for tpu_custom_call.1']
    #allocation13 [shape = 'u8[32768]{0}', space=vmem, size = 0x8000, scoped, tag = 'input window, operand 7, single buffered']
    #allocation14 [shape = 'u8[16384]{0}', space=vmem, size = 0x4000, scoped, tag = 'output window, operand 0']
    %14 = vsyncpa [#allocation3], 0
    %s15 = scalar_lea.sflag [#allocation3], 1
    %16 = vsyncpa %s15, 0
    %17 = vsyncpa [#allocation6], 0
    %18 = vsyncpa [#allocation9], 0
    %19 = vsyncpa [#allocation12], 0
    %20 = vsyncpa [#allocation4], 0
    %s21 = scalar_lea.sflag [#allocation4], 1
    %22 = vsyncpa %s21, 0
    loop: start=0, step=1, limit=6
    $region2: #{tpu_custom_call.1} parent=1 // loop_pre_header
      _
    $region3: #{tpu_custom_call.1} parent=1 // loop_header
      %s24 = sphi 0, %s28
      %p25 = scmp.ge.s32.totalorder %s24, 6
      %s34 = sphi 0, %s36
      %s37 = sphi 0, %s34
      %s38 = sphi 0, %s37
      %s54 = sphi 0, %s38
      %s58 = sphi 0, %s58
      %s60 = sphi 0, %s58
      %s61 = sphi 0, %s60
      %s75 = sphi 0, %s61
      %s79 = sphi 0, %s79
      %s81 = sphi 0, %s79
      %s82 = sphi 0, %s81
      %s96 = sphi 0, %s82
      %s100 = sphi 0, %s100
      %s102 = sphi 0, %s100
      %s103 = sphi 0, %s102
      %s117 = sphi 0, %s103
      %s121 = sphi 0, %s121
      %s123 = sphi 0, %s121
      %s124 = sphi 0, %s123
      %s138 = sphi 0, %s124
      %s142 = sphi 0, %s142
      %s144 = sphi 0, %s142
      %s145 = sphi 0, %s144
      %s159 = sphi 0, %s145
      %s163 = sphi 0, %s163
      %s165 = sphi 0, %s163
      %s166 = sphi 0, %s165
      %s180 = sphi 0, %s166
      %s184 = sphi 0, %s184
      %s186 = sphi 0, %s184
      %s187 = sphi 0, %s186
      %s201 = sphi 0, %s187
      %s205 = sphi 0, %s205
      %s207 = sphi 0, %s205
      %s208 = sphi 0, %s207
      %s222 = sphi 0, %s208
      %s228 = sphi 0, %s230
      %s231 = sphi 0, %s228
      %s232 = sphi 0, %s231
      %s248 = sphi 0, %s232
    $region4: #{tpu_custom_call.1} parent=1 // loop_header_branch
      %27 = sbr.rel (%p25) target = $region8
    $region5: #{tpu_custom_call.1} parent=1 // loop_body
      %s29 = ssub.s32 %s24, 1
      %s30 = ssub.s32 %s24, 2
      %s31 = sadd.s32 %s24, 1
      %s32 = ssub.s32 %s24, %s31
      %p33 = scmp.eq.s32.totalorder %s32, 0
      %s35 = sadd.s32 %s34, 1
      %s36 = scalar_select %p33, %s34, %s35
      %p39 = pneg %p33
      %p40 = scmp.eq.s32.totalorder %s24, 3
      %p41 = por %p39, %p40
      %p42 = scmp.ne.s32.totalorder %s34, %s37
      %p43 = scmp.eq.s32.totalorder %s24, 0
      %p44 = por %p42, %p43
      %p45 = scmp.ne.s32.totalorder %s34, %s37
      %p46 = scmp.eq.s32.totalorder %s29, 3
      %p47 = por %p45, %p46
      %p48 = scmp.ne.s32.totalorder %s37, %s38
      %p49 = scmp.eq.s32.totalorder %s29, 0
      %p50 = por %p48, %p49
      %p51 = scmp.ne.s32.totalorder %s37, %s38
      %p52 = scmp.eq.s32.totalorder %s30, 3
      %p53 = por %p51, %p52
      %p55 = scmp.ne.s32.totalorder %s38, %s54
      %p56 = scmp.eq.s32.totalorder %s30, 0
      %p57 = por %p55, %p56
      %s59 = sadd.s32 %s58, 1
      %p62 = scmp.eq.s32.totalorder %s24, 3
      %p63 = scmp.ne.s32.totalorder %s58, %s60
      %p64 = scmp.eq.s32.totalorder %s24, 0
      %p65 = por %p63, %p64
      %p66 = scmp.ne.s32.totalorder %s58, %s60
      %p67 = scmp.eq.s32.totalorder %s29, 3
      %p68 = por %p66, %p67
      %p69 = scmp.ne.s32.totalorder %s60, %s61
      %p70 = scmp.eq.s32.totalorder %s29, 0
      %p71 = por %p69, %p70
      %p72 = scmp.ne.s32.totalorder %s60, %s61
      %p73 = scmp.eq.s32.totalorder %s30, 3
      %p74 = por %p72, %p73
      %p76 = scmp.ne.s32.totalorder %s61, %s75
      %p77 = scmp.eq.s32.totalorder %s30, 0
      %p78 = por %p76, %p77
      %s80 = sadd.s32 %s79, 1
      %p83 = scmp.eq.s32.totalorder %s24, 3
      %p84 = scmp.ne.s32.totalorder %s79, %s81
      %p85 = scmp.eq.s32.totalorder %s24, 0
      %p86 = por %p84, %p85
      %p87 = scmp.ne.s32.totalorder %s79, %s81
      %p88 = scmp.eq.s32.totalorder %s29, 3
      %p89 = por %p87, %p88
      %p90 = scmp.ne.s32.totalorder %s81, %s82
      %p91 = scmp.eq.s32.totalorder %s29, 0
      %p92 = por %p90, %p91
      %p93 = scmp.ne.s32.totalorder %s81, %s82
      %p94 = scmp.eq.s32.totalorder %s30, 3
      %p95 = por %p93, %p94
      %p97 = scmp.ne.s32.totalorder %s82, %s96
      %p98 = scmp.eq.s32.totalorder %s30, 0
      %p99 = por %p97, %p98
      %s101 = sadd.s32 %s100, 1
      %p104 = scmp.eq.s32.totalorder %s24, 3
      %p105 = scmp.ne.s32.totalorder %s100, %s102
      %p106 = scmp.eq.s32.totalorder %s24, 0
      %p107 = por %p105, %p106
      %p108 = scmp.ne.s32.totalorder %s100, %s102
      %p109 = scmp.eq.s32.totalorder %s29, 3
      %p110 = por %p108, %p109
      %p111 = scmp.ne.s32.totalorder %s102, %s103
      %p112 = scmp.eq.s32.totalorder %s29, 0
      %p113 = por %p111, %p112
      %p114 = scmp.ne.s32.totalorder %s102, %s103
      %p115 = scmp.eq.s32.totalorder %s30, 3
      %p116 = por %p114, %p115
      %p118 = scmp.ne.s32.totalorder %s103, %s117
      %p119 = scmp.eq.s32.totalorder %s30, 0
      %p120 = por %p118, %p119
      %s122 = sadd.s32 %s121, 1
      %p125 = scmp.eq.s32.totalorder %s24, 3
      %p126 = scmp.ne.s32.totalorder %s121, %s123
      %p127 = scmp.eq.s32.totalorder %s24, 0
      %p128 = por %p126, %p127
      %p129 = scmp.ne.s32.totalorder %s121, %s123
      %p130 = scmp.eq.s32.totalorder %s29, 3
      %p131 = por %p129, %p130
      %p132 = scmp.ne.s32.totalorder %s123, %s124
      %p133 = scmp.eq.s32.totalorder %s29, 0
      %p134 = por %p132, %p133
      %p135 = scmp.ne.s32.totalorder %s123, %s124
      %p136 = scmp.eq.s32.totalorder %s30, 3
      %p137 = por %p135, %p136
      %p139 = scmp.ne.s32.totalorder %s124, %s138
      %p140 = scmp.eq.s32.totalorder %s30, 0
      %p141 = por %p139, %p140
      %s143 = sadd.s32 %s142, 1
      %p146 = scmp.eq.s32.totalorder %s24, 3
      %p147 = scmp.ne.s32.totalorder %s142, %s144
      %p148 = scmp.eq.s32.totalorder %s24, 0
      %p149 = por %p147, %p148
      %p150 = scmp.ne.s32.totalorder %s142, %s144
      %p151 = scmp.eq.s32.totalorder %s29, 3
      %p152 = por %p150, %p151
      %p153 = scmp.ne.s32.totalorder %s144, %s145
      %p154 = scmp.eq.s32.totalorder %s29, 0
      %p155 = por %p153, %p154
      %p156 = scmp.ne.s32.totalorder %s144, %s145
      %p157 = scmp.eq.s32.totalorder %s30, 3
      %p158 = por %p156, %p157
      %p160 = scmp.ne.s32.totalorder %s145, %s159
      %p161 = scmp.eq.s32.totalorder %s30, 0
      %p162 = por %p160, %p161
      %s164 = sadd.s32 %s163, 1
      %p167 = scmp.eq.s32.totalorder %s24, 3
      %p168 = scmp.ne.s32.totalorder %s163, %s165
      %p169 = scmp.eq.s32.totalorder %s24, 0
      %p170 = por %p168, %p169
      %p171 = scmp.ne.s32.totalorder %s163, %s165
      %p172 = scmp.eq.s32.totalorder %s29, 3
      %p173 = por %p171, %p172
      %p174 = scmp.ne.s32.totalorder %s165, %s166
      %p175 = scmp.eq.s32.totalorder %s29, 0
      %p176 = por %p174, %p175
      %p177 = scmp.ne.s32.totalorder %s165, %s166
      %p178 = scmp.eq.s32.totalorder %s30, 3
      %p179 = por %p177, %p178
      %p181 = scmp.ne.s32.totalorder %s166, %s180
      %p182 = scmp.eq.s32.totalorder %s30, 0
      %p183 = por %p181, %p182
      %s185 = sadd.s32 %s184, 1
      %p188 = scmp.eq.s32.totalorder %s24, 3
      %p189 = scmp.ne.s32.totalorder %s184, %s186
      %p190 = scmp.eq.s32.totalorder %s24, 0
      %p191 = por %p189, %p190
      %p192 = scmp.ne.s32.totalorder %s184, %s186
      %p193 = scmp.eq.s32.totalorder %s29, 3
      %p194 = por %p192, %p193
      %p195 = scmp.ne.s32.totalorder %s186, %s187
      %p196 = scmp.eq.s32.totalorder %s29, 0
      %p197 = por %p195, %p196
      %p198 = scmp.ne.s32.totalorder %s186, %s187
      %p199 = scmp.eq.s32.totalorder %s30, 3
      %p200 = por %p198, %p199
      %p202 = scmp.ne.s32.totalorder %s187, %s201
      %p203 = scmp.eq.s32.totalorder %s30, 0
      %p204 = por %p202, %p203
      %s206 = sadd.s32 %s205, 1
      %p209 = scmp.eq.s32.totalorder %s24, 3
      %p210 = scmp.ne.s32.totalorder %s205, %s207
      %p211 = scmp.eq.s32.totalorder %s24, 0
      %p212 = por %p210, %p211
      %p213 = scmp.ne.s32.totalorder %s205, %s207
      %p214 = scmp.eq.s32.totalorder %s29, 3
      %p215 = por %p213, %p214
      %p216 = scmp.ne.s32.totalorder %s207, %s208
      %p217 = scmp.eq.s32.totalorder %s29, 0
      %p218 = por %p216, %p217
      %p219 = scmp.ne.s32.totalorder %s207, %s208
      %p220 = scmp.eq.s32.totalorder %s30, 3
      %p221 = por %p219, %p220
      %p223 = scmp.ne.s32.totalorder %s208, %s222
      %p224 = scmp.eq.s32.totalorder %s30, 0
      %p225 = por %p223, %p224
      %s226 = ssub.s32 %s24, %s31
      %p227 = scmp.eq.s32.totalorder %s226, 0
      %s229 = sadd.s32 %s228, 1
      %s230 = scalar_select %p227, %s228, %s229
      %p233 = pneg %p227
      %p234 = scmp.eq.s32.totalorder %s24, 3
      %p235 = por %p233, %p234
      %p236 = scmp.ne.s32.totalorder %s228, %s231
      %p237 = scmp.eq.s32.totalorder %s24, 0
      %p238 = por %p236, %p237
      %p239 = scmp.ne.s32.totalorder %s228, %s231
      %p240 = scmp.eq.s32.totalorder %s29, 3
      %p241 = por %p239, %p240
      %p242 = scmp.ne.s32.totalorder %s231, %s232
      %p243 = scmp.eq.s32.totalorder %s29, 0
      %p244 = por %p242, %p243
      %p245 = scmp.ne.s32.totalorder %s231, %s232
      %p246 = scmp.eq.s32.totalorder %s30, 3
      %p247 = por %p245, %p246
      %p249 = scmp.ne.s32.totalorder %s232, %s248
      %p250 = scmp.eq.s32.totalorder %s30, 0
      %p251 = por %p249, %p250
      %p252 = scmp.le.s32.totalorder 1, %s24
      %p253 = scmp.lt.s32.totalorder %s24, 5
      %p254 = pnand %p252, %p253
      %p255 = pneg %p254
      // Predicated region
      $region9: #{tpu_custom_call.1} parent=5 // pred_check
        _
      $region10: #{tpu_custom_call.1} parent=5 // pred_check_branch
        %257 = sbr.rel (%p254) target = $region12
      $region11: #{tpu_custom_call.1} parent=5 // pred_region
        %s258 = ssub.s32 %s24, 1
        // Predicated region
        $region13: #{tpu_custom_call.1} parent=11 // pred_check
          %p259 = pneg %p71
        $region14: #{tpu_custom_call.1} parent=11 // pred_check_branch
          %261 = sbr.rel (%p259) target = $region16
        $region15: #{tpu_custom_call.1} parent=11 // pred_region
          %263 = vsyncadd [#allocation6], 0
          %s264 = sshll.u32 %s1, 4
          %s265 = int_to_ptr.hbm [resolvable:$true] %s264
          %s266 = sshll.u32 [#allocation5], 4
          %s267 = int_to_ptr.vmem [resolvable:$true] %s266
          %272 = dma.hbm_to_vmem [thread:$0]  %s265, 3456, %s267, [#allocation6], 128, 128, 8
        $region16: #{tpu_custom_call.1} parent=11 // pred_fallthru
          _
        // Predicated region
        $region17: #{tpu_custom_call.1} parent=11 // pred_check
          %p273 = pneg %p92
        $region18: #{tpu_custom_call.1} parent=11 // pred_check_branch
          %275 = sbr.rel (%p273) target = $region20
        $region19: #{tpu_custom_call.1} parent=11 // pred_region
          %277 = vsyncadd [#allocation6], 0
          %s279 = sshll.u32 %s2, 4
          %s280 = int_to_ptr.hbm [resolvable:$true] %s279
          %s281 = sshll.u32 [#allocation7], 4
          %s282 = int_to_ptr.vmem [resolvable:$true] %s281
          %284 = dma.hbm_to_vmem [thread:$0]  %s280, 32, %s282, [#allocation6]
        $region20: #{tpu_custom_call.1} parent=11 // pred_fallthru
          _
        // Predicated region
        $region21: #{tpu_custom_call.1} parent=11 // pred_check
          %p285 = pneg %p113
        $region22: #{tpu_custom_call.1} parent=11 // pred_check_branch
          %287 = sbr.rel (%p285) target = $region24
        $region23: #{tpu_custom_call.1} parent=11 // pred_region
          %289 = vsyncadd [#allocation9], 0
          %s290 = sshll.u32 %s3, 4
          %s291 = int_to_ptr.hbm [resolvable:$true] %s290
          %s292 = sshll.u32 [#allocation8], 4
          %s293 = int_to_ptr.vmem [resolvable:$true] %s292
          %298 = dma.hbm_to_vmem [thread:$0]  %s291, 10240, %s293, [#allocation9], 320, 320, 20
        $region24: #{tpu_custom_call.1} parent=11 // pred_fallthru
          _
        // Predicated region
        $region25: #{tpu_custom_call.1} parent=11 // pred_check
          %p299 = pneg %p134
        $region26: #{tpu_custom_call.1} parent=11 // pred_check_branch
          %301 = sbr.rel (%p299) target = $region28
        $region27: #{tpu_custom_call.1} parent=11 // pred_region
          %303 = vsyncadd [#allocation9], 0
          %s305 = sshll.u32 %s4, 4
          %s306 = int_to_ptr.hbm [resolvable:$true] %s305
          %s307 = sshll.u32 [#allocation10], 4
          %s308 = int_to_ptr.vmem [resolvable:$true] %s307
          %310 = dma.hbm_to_vmem [thread:$0]  %s306, 80, %s308, [#allocation9]
        $region28: #{tpu_custom_call.1} parent=11 // pred_fallthru
          _
        // Predicated region
        $region29: #{tpu_custom_call.1} parent=11 // pred_check
          %p311 = pneg %p155
        $region30: #{tpu_custom_call.1} parent=11 // pred_check_branch
          %313 = sbr.rel (%p311) target = $region32
        $region31: #{tpu_custom_call.1} parent=11 // pred_region
          %315 = vsyncadd [#allocation12], 0
          %s316 = sshll.u32 %s5, 4
          %s317 = int_to_ptr.hbm [resolvable:$true] %s316
          %s318 = sshll.u32 [#allocation11], 4
          %s319 = int_to_ptr.vmem [resolvable:$true] %s318
          %324 = dma.hbm_to_vmem [thread:$0]  %s317, 5120, %s319, [#allocation12], 64, 64, 4
        $region32: #{tpu_custom_call.1} parent=11 // pred_fallthru
          _
        // Predicated region
        $region33: #{tpu_custom_call.1} parent=11 // pred_check
          %p325 = pneg %p176
        $region34: #{tpu_custom_call.1} parent=11 // pred_check_branch
          %327 = sbr.rel (%p325) target = $region36
        $region35: #{tpu_custom_call.1} parent=11 // pred_region
          _
        $region36: #{tpu_custom_call.1} parent=11 // pred_fallthru
          _
        // Predicated region
        $region37: #{tpu_custom_call.1} parent=11 // pred_check
          %p328 = pneg %p197
        $region38: #{tpu_custom_call.1} parent=11 // pred_check_branch
          %330 = sbr.rel (%p328) target = $region40
        $region39: #{tpu_custom_call.1} parent=11 // pred_region
          %332 = vsyncadd [#allocation12], 0
          %s333 = sshll.u32 %s7, 4
          %s334 = int_to_ptr.hbm [resolvable:$true] %s333
          %s335 = sshll.u32 [#allocation13], 4
          %s336 = int_to_ptr.vmem [resolvable:$true] %s335
          %341 = dma.hbm_to_vmem [thread:$0]  %s334, 1024, %s336, [#allocation12], 64, 64, 4
        $region40: #{tpu_custom_call.1} parent=11 // pred_fallthru
          _
        // Predicated region
        $region41: #{tpu_custom_call.1} parent=11 // pred_check
          %p342 = pneg %p218
        $region42: #{tpu_custom_call.1} parent=11 // pred_check_branch
          %344 = sbr.rel (%p342) target = $region44
        $region43: #{tpu_custom_call.1} parent=11 // pred_region
          _
        $region44: #{tpu_custom_call.1} parent=11 // pred_fallthru
          _
      $region12: #{tpu_custom_call.1} parent=5 // pred_fallthru
        _
      %p345 = scmp.lt.s32.totalorder %s24, 4
      // Predicated region
      $region45: #{tpu_custom_call.1} parent=5 // pred_check
        %p346 = pneg %p345
      $region46: #{tpu_custom_call.1} parent=5 // pred_check_branch
        %348 = sbr.rel (%p346) target = $region48
      $region47: #{tpu_custom_call.1} parent=5 // pred_region
        // Predicated region
        $region49: #{tpu_custom_call.1} parent=47 // pred_check
          %p349 = pneg %p44
        $region50: #{tpu_custom_call.1} parent=47 // pred_check_branch
          %351 = sbr.rel (%p349) target = $region52
        $region51: #{tpu_custom_call.1} parent=47 // pred_region
          %s352 = sand.u32 %s34, 1
          %s353 = scalar_lea.sflag [#allocation3], %s352
          %s354 = sand.u32 %s34, 1
          %s355 = smul.addr %s354, 32
          %s356 = scalar_lea.vmem [#allocation2], %s355
          %s357 = smul.u32 2, %s24
          %s358 = ssub.s32 7, %s357
          %p359 = scmp.lt.s32.totalorder %s358, 2
          %s360 = scalar_select %p359, %s358, 2
          %s361 = smul.u32 8, %s360
          %s362 = smul.u32 %s361, 2
          %s363 = ssub.s32 32, %s362
          %s364 = sshll.u32 %s363, 4
          %365 = vsyncadd %s353, %s364
          %p366 = scmp.ne.s32.totalorder 0, %s362
          %s367 = smul.addr %s357, 2
          %s368 = smul.addr %s367, 8
          %s369 = scalar_lea.hbm %s0, %s368
          %s370 = smul.u32 16, %s360
          %s371 = sshll.u32 %s369, 4
          %s372 = int_to_ptr.hbm [resolvable:$true] %s371
          %s373 = sshll.u32 %s356, 4
          %s374 = int_to_ptr.vmem [resolvable:$true] %s373
          %s375 = sshll.u32 %s370, 4
          %379 = dma.hbm_to_vmem [thread:$0]  (%p366), %s372, %s375, %s374, %s353, 256, 256, 16
        $region52: #{tpu_custom_call.1} parent=47 // pred_fallthru
          _
      $region48: #{tpu_custom_call.1} parent=5 // pred_fallthru
        _
      %p380 = scmp.le.s32.totalorder 1, %s24
      %p381 = scmp.lt.s32.totalorder %s24, 5
      %p382 = pnand %p380, %p381
      %p383 = pneg %p382
      // Predicated region
      $region53: #{tpu_custom_call.1} parent=5 // pred_check
        _
      $region54: #{tpu_custom_call.1} parent=5 // pred_check_branch
        %385 = sbr.rel (%p382) target = $region56
      $region55: #{tpu_custom_call.1} parent=5 // pred_region
        %s386 = ssub.s32 %s24, 1
        %s387 = sand.u32 %s37, 1
        %s388 = scalar_lea.sflag [#allocation3], %s387
        %s389 = sand.u32 %s37, 1
        %s390 = smul.addr %s389, 32
        %s391 = scalar_lea.vmem [#allocation2], %s390
        // Predicated region
        $region57: #{tpu_custom_call.1} parent=55 // pred_check
          %p392 = pneg %p50
        $region58: #{tpu_custom_call.1} parent=55 // pred_check_branch
          %394 = sbr.rel (%p392) target = $region60
        $region59: #{tpu_custom_call.1} parent=55 // pred_region
          %396 = dma.done %s388, 512
        $region60: #{tpu_custom_call.1} parent=55 // pred_fallthru
          _
        // Predicated region
        $region61: #{tpu_custom_call.1} parent=55 // pred_check
          %p397 = pneg %p71
        $region62: #{tpu_custom_call.1} parent=55 // pred_check_branch
          %399 = sbr.rel (%p397) target = $region64
        $region63: #{tpu_custom_call.1} parent=55 // pred_region
          %401 = dma.done [#allocation6], 3456
        $region64: #{tpu_custom_call.1} parent=55 // pred_fallthru
          _
        // Predicated region
        $region65: #{tpu_custom_call.1} parent=55 // pred_check
          %p402 = pneg %p92
        $region66: #{tpu_custom_call.1} parent=55 // pred_check_branch
          %404 = sbr.rel (%p402) target = $region68
        $region67: #{tpu_custom_call.1} parent=55 // pred_region
          %406 = dma.done [#allocation6], 32
        $region68: #{tpu_custom_call.1} parent=55 // pred_fallthru
          _
        // Predicated region
        $region69: #{tpu_custom_call.1} parent=55 // pred_check
          %p407 = pneg %p113
        $region70: #{tpu_custom_call.1} parent=55 // pred_check_branch
          %409 = sbr.rel (%p407) target = $region72
        $region71: #{tpu_custom_call.1} parent=55 // pred_region
          %411 = dma.done [#allocation9], 10240
        $region72: #{tpu_custom_call.1} parent=55 // pred_fallthru
          _
        // Predicated region
        $region73: #{tpu_custom_call.1} parent=55 // pred_check
          %p412 = pneg %p134
        $region74: #{tpu_custom_call.1} parent=55 // pred_check_branch
          %414 = sbr.rel (%p412) target = $region76
        $region75: #{tpu_custom_call.1} parent=55 // pred_region
          %416 = dma.done [#allocation9], 80
        $region76: #{tpu_custom_call.1} parent=55 // pred_fallthru
          _
        // Predicated region
        $region77: #{tpu_custom_call.1} parent=55 // pred_check
          %p417 = pneg %p155
        $region78: #{tpu_custom_call.1} parent=55 // pred_check_branch
          %419 = sbr.rel (%p417) target = $region80
        $region79: #{tpu_custom_call.1} parent=55 // pred_region
          %421 = dma.done [#allocation12], 5120
        $region80: #{tpu_custom_call.1} parent=55 // pred_fallthru
          _
        // Predicated region
        $region81: #{tpu_custom_call.1} parent=55 // pred_check
          %p422 = pneg %p197
        $region82: #{tpu_custom_call.1} parent=55 // pred_check_branch
          %424 = sbr.rel (%p422) target = $region84
        $region83: #{tpu_custom_call.1} parent=55 // pred_region
          %426 = dma.done [#allocation12], 1024
        $region84: #{tpu_custom_call.1} parent=55 // pred_fallthru
          _
        %s427 = sand.u32 %s37, 1
        %s428 = scalar_lea.sflag [#allocation3], %s427
        %s429 = sand.u32 %s37, 1
        %s430 = smul.addr %s429, 32
        %s431 = scalar_lea.vmem [#allocation2], %s430
        %p432 = pneg %p50
        %p433 = pneg %p47
        %p434 = pneg %p71
        %p435 = pneg %p68
        %p436 = pneg %p92
        %p437 = pneg %p89
        %p438 = pneg %p113
        %p439 = pneg %p110
        %p440 = pneg %p134
        %p441 = pneg %p131
        %p442 = pneg %p155
        %p443 = pneg %p152
        %p444 = pneg %p176
        %p445 = pneg %p173
        %p446 = pneg %p197
        %p447 = pneg %p194
        %p448 = pneg %p218
        %p449 = pneg %p215
        %p450 = pneg %p244
        %p451 = pneg %p241
        %s452 = sand.u32 %s231, 1
        %s453 = scalar_lea.sflag [#allocation4], %s452
        %s454 = sand.u32 %s231, 1
        %s455 = smul.addr %s454, 16
        %s456 = scalar_lea.vmem [#allocation14], %s455
        %s457 = smul.u32 2, %s29
        %s458 = ssub.s32 7, %s457
        %p459 = scmp.lt.s32.totalorder %s458, 2
        %s460 = scalar_select %p459, %s458, 2
        %s461 = smul.u32 8, %s460
        %s462 = smul.u32 %s461, 2
        %s463 = smul.u32 2, %s29
        %s464 = ssub.s32 7, %s463
        %p465 = scmp.lt.s32.totalorder %s464, 2
        %s466 = scalar_select %p465, %s464, 2
        %s467 = smul.u32 8, %s466
        %v469 = vld [vmem:[#allocation5] sm:$0xff]
        %v470 = vld [vmem:[#allocation5 + $0x8] sm:$0xff]
        %v471 = vld [vmem:[#allocation5 + $0x10] sm:$0xff]
        %v472 = vld [vmem:[#allocation5 + $0x18] sm:$0xff]
        %v473 = vld [vmem:[#allocation5 + $0x20] sm:$0xff]
        %v474 = vld [vmem:[#allocation5 + $0x28] sm:$0xff]
        %v475 = vld [vmem:[#allocation5 + $0x30] sm:$0xff]
        %v476 = vld [vmem:[#allocation5 + $0x38] sm:$0xff]
        %v477 = vld [vmem:[#allocation5 + $0x40] sm:$0xff]
        %v478 = vld [vmem:[#allocation5 + $0x48] sm:$0xff]
        %v479 = vld [vmem:[#allocation5 + $0x50] sm:$0xff]
        %v480 = vld [vmem:[#allocation5 + $0x58] sm:$0xff]
        %v481 = vld [vmem:[#allocation5 + $0x60] sm:$0xff]
        %v482 = vld [vmem:[#allocation5 + $0x68] sm:$0xff]
        %v483 = vld [vmem:[#allocation5 + $0x70] sm:$0xff]
        %v484 = vld [vmem:[#allocation5 + $0x78] sm:$0xff]
        %v485 = vld [vmem:[#allocation5 + $0x80] sm:$0xff]
        %v486 = vld [vmem:[#allocation5 + $0x88] sm:$0xff]
        %v487 = vld [vmem:[#allocation5 + $0x90] sm:$0xff]
        %v488 = vld [vmem:[#allocation5 + $0x98] sm:$0xff]
        %v489 = vld [vmem:[#allocation5 + $0xa0] sm:$0xff]
        %v490 = vld [vmem:[#allocation5 + $0xa8] sm:$0xff]
        %v491 = vld [vmem:[#allocation5 + $0xb0] sm:$0xff]
        %v492 = vld [vmem:[#allocation5 + $0xb8] sm:$0xff]
        %v493 = vld [vmem:[#allocation5 + $0xc0] sm:$0xff]
        %v494 = vld [vmem:[#allocation5 + $0xc8] sm:$0xff]
        %v495 = vld [vmem:[#allocation5 + $0xd0] sm:$0x11]
        %v496 = vld [vmem:[%s391] sm:$0xff]
        %v497 = vld [vmem:[%s391 + $0x8] sm:$0xff]
        %v498 = vld [vmem:[%s391 + $0x10] sm:$0xff]
        %v499 = vld [vmem:[%s391 + $0x18] sm:$0xff]
        %v500 = vpack.c.bf16 %v498, %v496
        %v501 = vpack.c.bf16 %v499, %v497
        %v502 = vld [vmem:[#allocation7] sm:$0x3]
        %v504 = vperm.slane %v502, 0
        %v505 = vperm.slane %v502, 1
        %v535 = vunpack.c.l.b16 %v469
        %v536 = vunpack.c.h.b16 %v469
        %v537 = vunpack.c.l.b16 %v470
        %v538 = vunpack.c.h.b16 %v470
        %v539 = vunpack.c.l.b16 %v471
        %v540 = vunpack.c.h.b16 %v471
        %v541 = vunpack.c.l.b16 %v472
        %v542 = vunpack.c.h.b16 %v472
        %v543 = vunpack.c.l.b16 %v473
        %v544 = vunpack.c.h.b16 %v473
        %v545 = vunpack.c.l.b16 %v474
        %v546 = vunpack.c.h.b16 %v474
        %v547 = vunpack.c.l.b16 %v475
        %v548 = vunpack.c.h.b16 %v475
        %v549 = vunpack.c.l.b16 %v476
        %v550 = vunpack.c.h.b16 %v476
        %v551 = vunpack.c.l.b16 %v477
        %v552 = vunpack.c.h.b16 %v477
        %v553 = vunpack.c.l.b16 %v478
        %v554 = vunpack.c.h.b16 %v478
        %v555 = vunpack.c.l.b16 %v479
        %v556 = vunpack.c.h.b16 %v479
        %v557 = vunpack.c.l.b16 %v480
        %v558 = vunpack.c.h.b16 %v480
        %v559 = vunpack.c.l.b16 %v481
        %v560 = vunpack.c.h.b16 %v481
        %v561 = vunpack.c.l.b16 %v482
        %v562 = vunpack.c.h.b16 %v482
        %v563 = vunpack.c.l.b16 %v483
        %v564 = vunpack.c.h.b16 %v483
        %v565 = vunpack.c.l.b16 %v484
        %v566 = vunpack.c.h.b16 %v484
        %v567 = vunpack.c.l.b16 %v485
        %v568 = vunpack.c.h.b16 %v485
        %v569 = vunpack.c.l.b16 %v486
        %v570 = vunpack.c.h.b16 %v486
        %v571 = vunpack.c.l.b16 %v487
        %v572 = vunpack.c.h.b16 %v487
        %v573 = vunpack.c.l.b16 %v488
        %v574 = vunpack.c.h.b16 %v488
        %v575 = vunpack.c.l.b16 %v489
        %v576 = vunpack.c.h.b16 %v489
        %v577 = vunpack.c.l.b16 %v490
        %v578 = vunpack.c.h.b16 %v490
        %v579 = vunpack.c.l.b16 %v491
        %v580 = vunpack.c.h.b16 %v491
        %v581 = vunpack.c.l.b16 %v492
        %v582 = vunpack.c.h.b16 %v492
        %v583 = vunpack.c.l.b16 %v493
        %v584 = vunpack.c.h.b16 %v493
        %v585 = vunpack.c.l.b16 %v494
        %v586 = vunpack.c.h.b16 %v494
        %v587 = vunpack.c.l.b16 %v495
        %v588 = vunpack.c.h.b16 %v495
        %v589 = vpack.c.b16 %v537, %v535
        %v590 = vpack.c.b16 %v538, %v536
        %v591 = vpack.c.b16 %v541, %v539
        %v592 = vpack.c.b16 %v542, %v540
        %v593 = vpack.c.b16 %v545, %v543
        %v594 = vpack.c.b16 %v546, %v544
        %v595 = vpack.c.b16 %v549, %v547
        %v596 = vpack.c.b16 %v550, %v548
        %v597 = vpack.c.b16 %v553, %v551
        %v598 = vpack.c.b16 %v554, %v552
        %v599 = vpack.c.b16 %v557, %v555
        %v600 = vpack.c.b16 %v558, %v556
        %v601 = vpack.c.b16 %v561, %v559
        %v602 = vpack.c.b16 %v562, %v560
        %v603 = vpack.c.b16 %v565, %v563
        %v604 = vpack.c.b16 %v566, %v564
        %v605 = vpack.c.b16 %v569, %v567
        %v606 = vpack.c.b16 %v570, %v568
        %v607 = vpack.c.b16 %v573, %v571
        %v608 = vpack.c.b16 %v574, %v572
        %v609 = vpack.c.b16 %v577, %v575
        %v610 = vpack.c.b16 %v578, %v576
        %v611 = vpack.c.b16 %v581, %v579
        %v612 = vpack.c.b16 %v582, %v580
        %v613 = vpack.c.b16 %v585, %v583
        %v614 = vpack.c.b16 %v586, %v584
        %v615 = vpack.c.b16 %v587, %v587
        %v616 = vpack.c.b16 %v588, %v588
        %vm643 = vcmask 670720
        %v645 = vsel %vm643, %v501, 0
        %vm647 = vcmask 1040384
        %v649 = vsel %vm647, %v615, 0
        %v652 = vsel %vm647, %v616, 0
        %654 = vmatpush.bf16.msra.mxu0 %v603
        %655 = vmatpush.bf16.msra.mxu0 %v601
        %656 = vmatpush.bf16.msra.mxu0 %v599
        %657 = vmatpush.bf16.msra.mxu0 %v597
        %658 = vmatpush.bf16.msra.mxu0 %v595
        %659 = vmatpush.bf16.msra.mxu0 %v593
        %660 = vmatpush.bf16.msra.mxu0 %v591
        %661 = vmatpush.bf16.msra.mxu0 %v589
        %662 = vmatmul.bf16.gmra.mxu0 %v500
        %v663 = vpop.f32.mrf.mxu0
        %v664 = vadd.f32 %v504, %v663
        %v665 = vpop.f32.mrf.mxu0
        %v666 = vadd.f32 %v504, %v665
        %667 = vdwg.mxu0
        %668 = vmatpush.bf16.msra.mxu0 0
        %669 = vmatpush.bf16.msra.mxu0 0
        %670 = vmatpush.bf16.msra.mxu0 %v649
        %671 = vmatpush.bf16.msra.mxu0 %v613
        %672 = vmatpush.bf16.msra.mxu0 %v611
        %673 = vmatpush.bf16.msra.mxu0 %v609
        %674 = vmatpush.bf16.msra.mxu0 %v607
        %675 = vmatpush.bf16.msra.mxu0 %v605
        %676 = vmatmul.bf16.gmra.mxu0 %v645
        %v677 = vpop.f32.mrf.mxu0
        %v678 = vadd.f32 %v664, %v677
        %v679 = vpop.f32.mrf.mxu0
        %v680 = vadd.f32 %v666, %v679
        %681 = vdwg.mxu0
        %682 = vmatpush.bf16.msra.mxu0 %v604
        %683 = vmatpush.bf16.msra.mxu0 %v602
        %684 = vmatpush.bf16.msra.mxu0 %v600
        %685 = vmatpush.bf16.msra.mxu0 %v598
        %686 = vmatpush.bf16.msra.mxu0 %v596
        %687 = vmatpush.bf16.msra.mxu0 %v594
        %688 = vmatpush.bf16.msra.mxu0 %v592
        %689 = vmatpush.bf16.msra.mxu0 %v590
        %690 = vmatmul.bf16.gmra.mxu0 %v500
        %v691 = vpop.f32.mrf.mxu0
        %v692 = vadd.f32 %v505, %v691
        %v693 = vpop.f32.mrf.mxu0
        %v694 = vadd.f32 %v505, %v693
        %695 = vdwg.mxu0
        %696 = vmatpush.bf16.msra.mxu0 0
        %697 = vmatpush.bf16.msra.mxu0 0
        %698 = vmatpush.bf16.msra.mxu0 %v652
        %699 = vmatpush.bf16.msra.mxu0 %v614
        %700 = vmatpush.bf16.msra.mxu0 %v612
        %701 = vmatpush.bf16.msra.mxu0 %v610
        %702 = vmatpush.bf16.msra.mxu0 %v608
        %703 = vmatpush.bf16.msra.mxu0 %v606
        %704 = vmatmul.bf16.gmra.mxu0 %v645
        %v705 = vpop.f32.mrf.mxu0
        %v706 = vadd.f32 %v692, %v705
        %v707 = vpop.f32.mrf.mxu0
        %v708 = vadd.f32 %v694, %v707
        %709 = vdwg.mxu0
        %v710 = vpack.c.bf16 %v706, %v678
        %v711 = vpack.c.bf16 %v708, %v680
        %v712 = vunpack.c.l.bf16 %v710
        %v713 = vunpack.c.h.bf16 %v710
        %v714 = vunpack.c.l.bf16 %v711
        %v715 = vunpack.c.h.bf16 %v711
        %v716 = vmax.f32 %v712, 0.0
        %v717 = vmax.f32 %v713, 0.0
        %v718 = vmax.f32 %v714, 0.0
        %v719 = vmax.f32 %v715, 0.0
        %v720 = vpack.c.bf16 %v718, %v716
        %v721 = vpack.c.bf16 %v719, %v717
        %v722 = vld [vmem:[#allocation8] sm:$0xff]
        %v723 = vld [vmem:[#allocation8 + $0x8] sm:$0xff]
        %v724 = vld [vmem:[#allocation8 + $0x10] sm:$0xf]
        %v725 = vld [vmem:[#allocation8 + $0x14] sm:$0xff]
        %v726 = vld [vmem:[#allocation8 + $0x1c] sm:$0xff]
        %v727 = vld [vmem:[#allocation8 + $0x24] sm:$0xf]
        %v728 = vld [vmem:[#allocation8 + $0x28] sm:$0xff]
        %v729 = vld [vmem:[#allocation8 + $0x30] sm:$0xff]
        %v730 = vld [vmem:[#allocation8 + $0x38] sm:$0xf]
        %v731 = vld [vmem:[#allocation8 + $0x3c] sm:$0xff]
        %v732 = vld [vmem:[#allocation8 + $0x44] sm:$0xff]
        %v733 = vld [vmem:[#allocation8 + $0x4c] sm:$0xf]
        %v734 = vld [vmem:[#allocation8 + $0x50] sm:$0xff]
        %v735 = vld [vmem:[#allocation8 + $0x58] sm:$0xff]
        %v736 = vld [vmem:[#allocation8 + $0x60] sm:$0xf]
        %v737 = vld [vmem:[#allocation8 + $0x64] sm:$0xff]
        %v738 = vld [vmem:[#allocation8 + $0x6c] sm:$0xff]
        %v739 = vld [vmem:[#allocation8 + $0x74] sm:$0xf]
        %v740 = vld [vmem:[#allocation8 + $0x78] sm:$0xff]
        %v741 = vld [vmem:[#allocation8 + $0x80] sm:$0xff]
        %v742 = vld [vmem:[#allocation8 + $0x88] sm:$0xf]
        %v743 = vld [vmem:[#allocation8 + $0x8c] sm:$0xff]
        %v744 = vld [vmem:[#allocation8 + $0x94] sm:$0xff]
        %v745 = vld [vmem:[#allocation8 + $0x9c] sm:$0xf]
        %v746 = vld [vmem:[#allocation8 + $0xa0] sm:$0xff]
        %v747 = vld [vmem:[#allocation8 + $0xa8] sm:$0xff]
        %v748 = vld [vmem:[#allocation8 + $0xb0] sm:$0xf]
        %v749 = vld [vmem:[#allocation8 + $0xb4] sm:$0xff]
        %v750 = vld [vmem:[#allocation8 + $0xbc] sm:$0xff]
        %v751 = vld [vmem:[#allocation8 + $0xc4] sm:$0xf]
        %v752 = vld [vmem:[#allocation8 + $0xc8] sm:$0xff]
        %v753 = vld [vmem:[#allocation8 + $0xd0] sm:$0xff]
        %v754 = vld [vmem:[#allocation8 + $0xd8] sm:$0xf]
        %v755 = vld [vmem:[#allocation8 + $0xdc] sm:$0xff]
        %v756 = vld [vmem:[#allocation8 + $0xe4] sm:$0xff]
        %v757 = vld [vmem:[#allocation8 + $0xec] sm:$0xf]
        %v758 = vld [vmem:[#allocation8 + $0xf0] sm:$0xff]
        %v759 = vld [vmem:[#allocation8 + $0xf8] sm:$0xff]
        %v760 = vld [vmem:[#allocation8 + $0x100] sm:$0xf]
        %v761 = vld [vmem:[#allocation8 + $0x104] sm:$0xff]
        %v762 = vld [vmem:[#allocation8 + $0x10c] sm:$0xff]
        %v763 = vld [vmem:[#allocation8 + $0x114] sm:$0xf]
        %v764 = vld [vmem:[#allocation8 + $0x118] sm:$0xff]
        %v765 = vld [vmem:[#allocation8 + $0x120] sm:$0xff]
        %v766 = vld [vmem:[#allocation8 + $0x128] sm:$0xf]
        %v767 = vld [vmem:[#allocation8 + $0x12c] sm:$0xff]
        %v768 = vld [vmem:[#allocation8 + $0x134] sm:$0xff]
        %v769 = vld [vmem:[#allocation8 + $0x13c] sm:$0xf]
        %v770 = vld [vmem:[#allocation8 + $0x140] sm:$0xff]
        %v771 = vld [vmem:[#allocation8 + $0x148] sm:$0xff]
        %v772 = vld [vmem:[#allocation8 + $0x150] sm:$0xf]
        %v773 = vld [vmem:[#allocation8 + $0x154] sm:$0xff]
        %v774 = vld [vmem:[#allocation8 + $0x15c] sm:$0xff]
        %v775 = vld [vmem:[#allocation8 + $0x164] sm:$0xf]
        %v776 = vld [vmem:[#allocation8 + $0x168] sm:$0xff]
        %v777 = vld [vmem:[#allocation8 + $0x170] sm:$0xff]
        %v778 = vld [vmem:[#allocation8 + $0x178] sm:$0xf]
        %v779 = vld [vmem:[#allocation8 + $0x17c] sm:$0xff]
        %v780 = vld [vmem:[#allocation8 + $0x184] sm:$0xff]
        %v781 = vld [vmem:[#allocation8 + $0x18c] sm:$0xf]
        %v782 = vld [vmem:[#allocation8 + $0x190] sm:$0xff]
        %v783 = vld [vmem:[#allocation8 + $0x198] sm:$0xff]
        %v784 = vld [vmem:[#allocation8 + $0x1a0] sm:$0xf]
        %v785 = vld [vmem:[#allocation8 + $0x1a4] sm:$0xff]
        %v786 = vld [vmem:[#allocation8 + $0x1ac] sm:$0xff]
        %v787 = vld [vmem:[#allocation8 + $0x1b4] sm:$0xf]
        %v788 = vld [vmem:[#allocation8 + $0x1b8] sm:$0xff]
        %v789 = vld [vmem:[#allocation8 + $0x1c0] sm:$0xff]
        %v790 = vld [vmem:[#allocation8 + $0x1c8] sm:$0xf]
        %v791 = vld [vmem:[#allocation8 + $0x1cc] sm:$0xff]
        %v792 = vld [vmem:[#allocation8 + $0x1d4] sm:$0xff]
        %v793 = vld [vmem:[#allocation8 + $0x1dc] sm:$0xf]
        %v794 = vld [vmem:[#allocation8 + $0x1e0] sm:$0xff]
        %v795 = vld [vmem:[#allocation8 + $0x1e8] sm:$0xff]
        %v796 = vld [vmem:[#allocation8 + $0x1f0] sm:$0xf]
        %v797 = vld [vmem:[#allocation8 + $0x1f4] sm:$0xff]
        %v798 = vld [vmem:[#allocation8 + $0x1fc] sm:$0xff]
        %v799 = vld [vmem:[#allocation8 + $0x204] sm:$0xf]
        %v800 = vld [vmem:[#allocation8 + $0x208] sm:$0xff]
        %v801 = vld [vmem:[#allocation8 + $0x210] sm:$0xff]
        %v802 = vld [vmem:[#allocation8 + $0x218] sm:$0xf]
        %v803 = vld [vmem:[#allocation8 + $0x21c] sm:$0xff]
        %v804 = vld [vmem:[#allocation8 + $0x224] sm:$0xff]
        %v805 = vld [vmem:[#allocation8 + $0x22c] sm:$0xf]
        %v806 = vld [vmem:[#allocation8 + $0x230] sm:$0xff]
        %v807 = vld [vmem:[#allocation8 + $0x238] sm:$0xff]
        %v808 = vld [vmem:[#allocation8 + $0x240] sm:$0xf]
        %v809 = vld [vmem:[#allocation8 + $0x244] sm:$0xff]
        %v810 = vld [vmem:[#allocation8 + $0x24c] sm:$0xff]
        %v811 = vld [vmem:[#allocation8 + $0x254] sm:$0xf]
        %v812 = vld [vmem:[#allocation8 + $0x258] sm:$0xff]
        %v813 = vld [vmem:[#allocation8 + $0x260] sm:$0xff]
        %v814 = vld [vmem:[#allocation8 + $0x268] sm:$0xf]
        %v815 = vld [vmem:[#allocation8 + $0x26c] sm:$0xff]
        %v816 = vld [vmem:[#allocation8 + $0x274] sm:$0xff]
        %v817 = vld [vmem:[#allocation8 + $0x27c] sm:$0xf]
        %v818 = vld [vmem:[#allocation10] sm:$0x1f]
        %v820 = vperm.slane %v818, 0
        %v821 = vperm.slane %v818, 1
        %v822 = vperm.slane %v818, 2
        %v823 = vperm.slane %v818, 3
        %v824 = vperm.slane %v818, 4
        %v926 = vunpack.c.l.b16 %v722
        %v927 = vunpack.c.h.b16 %v722
        %v928 = vunpack.c.l.b16 %v723
        %v929 = vunpack.c.h.b16 %v723
        %v930 = vunpack.c.l.b16 %v724
        %v931 = vunpack.c.l.b16 %v725
        %v932 = vunpack.c.h.b16 %v725
        %v933 = vunpack.c.l.b16 %v726
        %v934 = vunpack.c.h.b16 %v726
        %v935 = vunpack.c.l.b16 %v727
        %v936 = vunpack.c.l.b16 %v728
        %v937 = vunpack.c.h.b16 %v728
        %v938 = vunpack.c.l.b16 %v729
        %v939 = vunpack.c.h.b16 %v729
        %v940 = vunpack.c.l.b16 %v730
        %v941 = vunpack.c.l.b16 %v731
        %v942 = vunpack.c.h.b16 %v731
        %v943 = vunpack.c.l.b16 %v732
        %v944 = vunpack.c.h.b16 %v732
        %v945 = vunpack.c.l.b16 %v733
        %v946 = vunpack.c.l.b16 %v734
        %v947 = vunpack.c.h.b16 %v734
        %v948 = vunpack.c.l.b16 %v735
        %v949 = vunpack.c.h.b16 %v735
        %v950 = vunpack.c.l.b16 %v736
        %v951 = vunpack.c.l.b16 %v737
        %v952 = vunpack.c.h.b16 %v737
        %v953 = vunpack.c.l.b16 %v738
        %v954 = vunpack.c.h.b16 %v738
        %v955 = vunpack.c.l.b16 %v739
        %v956 = vunpack.c.l.b16 %v740
        %v957 = vunpack.c.h.b16 %v740
        %v958 = vunpack.c.l.b16 %v741
        %v959 = vunpack.c.h.b16 %v741
        %v960 = vunpack.c.l.b16 %v742
        %v961 = vunpack.c.l.b16 %v743
        %v962 = vunpack.c.h.b16 %v743
        %v963 = vunpack.c.l.b16 %v744
        %v964 = vunpack.c.h.b16 %v744
        %v965 = vunpack.c.l.b16 %v745
        %v966 = vunpack.c.l.b16 %v746
        %v967 = vunpack.c.h.b16 %v746
        %v968 = vunpack.c.l.b16 %v747
        %v969 = vunpack.c.h.b16 %v747
        %v970 = vunpack.c.l.b16 %v748
        %v971 = vunpack.c.l.b16 %v749
        %v972 = vunpack.c.h.b16 %v749
        %v973 = vunpack.c.l.b16 %v750
        %v974 = vunpack.c.h.b16 %v750
        %v975 = vunpack.c.l.b16 %v751
        %v976 = vunpack.c.l.b16 %v752
        %v977 = vunpack.c.h.b16 %v752
        %v978 = vunpack.c.l.b16 %v753
        %v979 = vunpack.c.h.b16 %v753
        %v980 = vunpack.c.l.b16 %v754
        %v981 = vunpack.c.l.b16 %v755
        %v982 = vunpack.c.h.b16 %v755
        %v983 = vunpack.c.l.b16 %v756
        %v984 = vunpack.c.h.b16 %v756
        %v985 = vunpack.c.l.b16 %v757
        %v986 = vunpack.c.l.b16 %v758
        %v987 = vunpack.c.h.b16 %v758
        %v988 = vunpack.c.l.b16 %v759
        %v989 = vunpack.c.h.b16 %v759
        %v990 = vunpack.c.l.b16 %v760
        %v991 = vunpack.c.l.b16 %v761
        %v992 = vunpack.c.h.b16 %v761
        %v993 = vunpack.c.l.b16 %v762
        %v994 = vunpack.c.h.b16 %v762
        %v995 = vunpack.c.l.b16 %v763
        %v996 = vunpack.c.l.b16 %v764
        %v997 = vunpack.c.h.b16 %v764
        %v998 = vunpack.c.l.b16 %v765
        %v999 = vunpack.c.h.b16 %v765
        %v1000 = vunpack.c.l.b16 %v766
        %v1001 = vunpack.c.l.b16 %v767
        %v1002 = vunpack.c.h.b16 %v767
        %v1003 = vunpack.c.l.b16 %v768
        %v1004 = vunpack.c.h.b16 %v768
        %v1005 = vunpack.c.l.b16 %v769
        %v1006 = vunpack.c.l.b16 %v770
        %v1007 = vunpack.c.h.b16 %v770
        %v1008 = vunpack.c.l.b16 %v771
        %v1009 = vunpack.c.h.b16 %v771
        %v1010 = vunpack.c.l.b16 %v772
        %v1011 = vunpack.c.l.b16 %v773
        %v1012 = vunpack.c.h.b16 %v773
        %v1013 = vunpack.c.l.b16 %v774
        %v1014 = vunpack.c.h.b16 %v774
        %v1015 = vunpack.c.l.b16 %v775
        %v1016 = vunpack.c.l.b16 %v776
        %v1017 = vunpack.c.h.b16 %v776
        %v1018 = vunpack.c.l.b16 %v777
        %v1019 = vunpack.c.h.b16 %v777
        %v1020 = vunpack.c.l.b16 %v778
        %v1021 = vunpack.c.l.b16 %v779
        %v1022 = vunpack.c.h.b16 %v779
        %v1023 = vunpack.c.l.b16 %v780
        %v1024 = vunpack.c.h.b16 %v780
        %v1025 = vunpack.c.l.b16 %v781
        %v1026 = vunpack.c.l.b16 %v782
        %v1027 = vunpack.c.h.b16 %v782
        %v1028 = vunpack.c.l.b16 %v783
        %v1029 = vunpack.c.h.b16 %v783
        %v1030 = vunpack.c.l.b16 %v784
        %v1031 = vunpack.c.l.b16 %v785
        %v1032 = vunpack.c.h.b16 %v785
        %v1033 = vunpack.c.l.b16 %v786
        %v1034 = vunpack.c.h.b16 %v786
        %v1035 = vunpack.c.l.b16 %v787
        %v1036 = vunpack.c.l.b16 %v788
        %v1037 = vunpack.c.h.b16 %v788
        %v1038 = vunpack.c.l.b16 %v789
        %v1039 = vunpack.c.h.b16 %v789
        %v1040 = vunpack.c.l.b16 %v790
        %v1041 = vunpack.c.l.b16 %v791
        %v1042 = vunpack.c.h.b16 %v791
        %v1043 = vunpack.c.l.b16 %v792
        %v1044 = vunpack.c.h.b16 %v792
        %v1045 = vunpack.c.l.b16 %v793
        %v1046 = vunpack.c.l.b16 %v794
        %v1047 = vunpack.c.h.b16 %v794
        %v1048 = vunpack.c.l.b16 %v795
        %v1049 = vunpack.c.h.b16 %v795
        %v1050 = vunpack.c.l.b16 %v796
        %v1051 = vunpack.c.l.b16 %v797
        %v1052 = vunpack.c.h.b16 %v797
        %v1053 = vunpack.c.l.b16 %v798
        %v1054 = vunpack.c.h.b16 %v798
        %v1055 = vunpack.c.l.b16 %v799
        %v1056 = vunpack.c.l.b16 %v800
        %v1057 = vunpack.c.h.b16 %v800
        %v1058 = vunpack.c.l.b16 %v801
        %v1059 = vunpack.c.h.b16 %v801
        %v1060 = vunpack.c.l.b16 %v802
        %v1061 = vunpack.c.l.b16 %v803
        %v1062 = vunpack.c.h.b16 %v803
        %v1063 = vunpack.c.l.b16 %v804
        %v1064 = vunpack.c.h.b16 %v804
        %v1065 = vunpack.c.l.b16 %v805
        %v1066 = vunpack.c.l.b16 %v806
        %v1067 = vunpack.c.h.b16 %v806
        %v1068 = vunpack.c.l.b16 %v807
        %v1069 = vunpack.c.h.b16 %v807
        %v1070 = vunpack.c.l.b16 %v808
        %v1071 = vunpack.c.l.b16 %v809
        %v1072 = vunpack.c.h.b16 %v809
        %v1073 = vunpack.c.l.b16 %v810
        %v1074 = vunpack.c.h.b16 %v810
        %v1075 = vunpack.c.l.b16 %v811
        %v1076 = vunpack.c.l.b16 %v812
        %v1077 = vunpack.c.h.b16 %v812
        %v1078 = vunpack.c.l.b16 %v813
        %v1079 = vunpack.c.h.b16 %v813
        %v1080 = vunpack.c.l.b16 %v814
        %v1081 = vunpack.c.l.b16 %v815
        %v1082 = vunpack.c.h.b16 %v815
        %v1083 = vunpack.c.l.b16 %v816
        %v1084 = vunpack.c.h.b16 %v816
        %v1085 = vunpack.c.l.b16 %v817
        %v1086 = vpack.c.b16 %v931, %v926
        %v1087 = vpack.c.b16 %v932, %v927
        %v1088 = vpack.c.b16 %v933, %v928
        %v1089 = vpack.c.b16 %v934, %v929
        %v1090 = vpack.c.b16 %v935, %v930
        %v1091 = vpack.c.b16 %v941, %v936
        %v1092 = vpack.c.b16 %v942, %v937
        %v1093 = vpack.c.b16 %v943, %v938
        %v1094 = vpack.c.b16 %v944, %v939
        %v1095 = vpack.c.b16 %v945, %v940
        %v1096 = vpack.c.b16 %v951, %v946
        %v1097 = vpack.c.b16 %v952, %v947
        %v1098 = vpack.c.b16 %v953, %v948
        %v1099 = vpack.c.b16 %v954, %v949
        %v1100 = vpack.c.b16 %v955, %v950
        %v1101 = vpack.c.b16 %v961, %v956
        %v1102 = vpack.c.b16 %v962, %v957
        %v1103 = vpack.c.b16 %v963, %v958
        %v1104 = vpack.c.b16 %v964, %v959
        %v1105 = vpack.c.b16 %v965, %v960
        %v1106 = vpack.c.b16 %v971, %v966
        %v1107 = vpack.c.b16 %v972, %v967
        %v1108 = vpack.c.b16 %v973, %v968
        %v1109 = vpack.c.b16 %v974, %v969
        %v1110 = vpack.c.b16 %v975, %v970
        %v1111 = vpack.c.b16 %v981, %v976
        %v1112 = vpack.c.b16 %v982, %v977
        %v1113 = vpack.c.b16 %v983, %v978
        %v1114 = vpack.c.b16 %v984, %v979
        %v1115 = vpack.c.b16 %v985, %v980
        %v1116 = vpack.c.b16 %v991, %v986
        %v1117 = vpack.c.b16 %v992, %v987
        %v1118 = vpack.c.b16 %v993, %v988
        %v1119 = vpack.c.b16 %v994, %v989
        %v1120 = vpack.c.b16 %v995, %v990
        %v1121 = vpack.c.b16 %v1001, %v996
        %v1122 = vpack.c.b16 %v1002, %v997
        %v1123 = vpack.c.b16 %v1003, %v998
        %v1124 = vpack.c.b16 %v1004, %v999
        %v1125 = vpack.c.b16 %v1005, %v1000
        %v1126 = vpack.c.b16 %v1011, %v1006
        %v1127 = vpack.c.b16 %v1012, %v1007
        %v1128 = vpack.c.b16 %v1013, %v1008
        %v1129 = vpack.c.b16 %v1014, %v1009
        %v1130 = vpack.c.b16 %v1015, %v1010
        %v1131 = vpack.c.b16 %v1021, %v1016
        %v1132 = vpack.c.b16 %v1022, %v1017
        %v1133 = vpack.c.b16 %v1023, %v1018
        %v1134 = vpack.c.b16 %v1024, %v1019
        %v1135 = vpack.c.b16 %v1025, %v1020
        %v1136 = vpack.c.b16 %v1031, %v1026
        %v1137 = vpack.c.b16 %v1032, %v1027
        %v1138 = vpack.c.b16 %v1033, %v1028
        %v1139 = vpack.c.b16 %v1034, %v1029
        %v1140 = vpack.c.b16 %v1035, %v1030
        %v1141 = vpack.c.b16 %v1041, %v1036
        %v1142 = vpack.c.b16 %v1042, %v1037
        %v1143 = vpack.c.b16 %v1043, %v1038
        %v1144 = vpack.c.b16 %v1044, %v1039
        %v1145 = vpack.c.b16 %v1045, %v1040
        %v1146 = vpack.c.b16 %v1051, %v1046
        %v1147 = vpack.c.b16 %v1052, %v1047
        %v1148 = vpack.c.b16 %v1053, %v1048
        %v1149 = vpack.c.b16 %v1054, %v1049
        %v1150 = vpack.c.b16 %v1055, %v1050
        %v1151 = vpack.c.b16 %v1061, %v1056
        %v1152 = vpack.c.b16 %v1062, %v1057
        %v1153 = vpack.c.b16 %v1063, %v1058
        %v1154 = vpack.c.b16 %v1064, %v1059
        %v1155 = vpack.c.b16 %v1065, %v1060
        %v1156 = vpack.c.b16 %v1071, %v1066
        %v1157 = vpack.c.b16 %v1072, %v1067
        %v1158 = vpack.c.b16 %v1073, %v1068
        %v1159 = vpack.c.b16 %v1074, %v1069
        %v1160 = vpack.c.b16 %v1075, %v1070
        %v1161 = vpack.c.b16 %v1081, %v1076
        %v1162 = vpack.c.b16 %v1082, %v1077
        %v1163 = vpack.c.b16 %v1083, %v1078
        %v1164 = vpack.c.b16 %v1084, %v1079
        %v1165 = vpack.c.b16 %v1085, %v1080
        %1246 = vmatpush.bf16.msra.mxu0 %v1121
        %1247 = vmatpush.bf16.msra.mxu0 %v1116
        %1248 = vmatpush.bf16.msra.mxu0 %v1111
        %1249 = vmatpush.bf16.msra.mxu0 %v1106
        %1250 = vmatpush.bf16.msra.mxu0 %v1101
        %1251 = vmatpush.bf16.msra.mxu0 %v1096
        %1252 = vmatpush.bf16.msra.mxu0 %v1091
        %1253 = vmatpush.bf16.msra.mxu0 %v1086
        %1254 = vmatmul.bf16.gmra.mxu0 %v720
        %v1255 = vpop.f32.mrf.mxu0
        %v1256 = vadd.f32 %v820, %v1255
        %v1257 = vpop.f32.mrf.mxu0
        %v1258 = vadd.f32 %v820, %v1257
        %1259 = vdwg.mxu0
        %1260 = vmatpush.bf16.msra.mxu0 %v1161
        %1261 = vmatpush.bf16.msra.mxu0 %v1156
        %1262 = vmatpush.bf16.msra.mxu0 %v1151
        %1263 = vmatpush.bf16.msra.mxu0 %v1146
        %1264 = vmatpush.bf16.msra.mxu0 %v1141
        %1265 = vmatpush.bf16.msra.mxu0 %v1136
        %1266 = vmatpush.bf16.msra.mxu0 %v1131
        %1267 = vmatpush.bf16.msra.mxu0 %v1126
        %1268 = vmatmul.bf16.gmra.mxu0 %v721
        %v1269 = vpop.f32.mrf.mxu0
        %v1270 = vadd.f32 %v1256, %v1269
        %v1271 = vpop.f32.mrf.mxu0
        %v1272 = vadd.f32 %v1258, %v1271
        %1273 = vdwg.mxu0
        %1274 = vmatpush.bf16.msra.mxu0 %v1122
        %1275 = vmatpush.bf16.msra.mxu0 %v1117
        %1276 = vmatpush.bf16.msra.mxu0 %v1112
        %1277 = vmatpush.bf16.msra.mxu0 %v1107
        %1278 = vmatpush.bf16.msra.mxu0 %v1102
        %1279 = vmatpush.bf16.msra.mxu0 %v1097
        %1280 = vmatpush.bf16.msra.mxu0 %v1092
        %1281 = vmatpush.bf16.msra.mxu0 %v1087
        %1282 = vmatmul.bf16.gmra.mxu0 %v720
        %v1283 = vpop.f32.mrf.mxu0
        %v1284 = vadd.f32 %v821, %v1283
        %v1285 = vpop.f32.mrf.mxu0
        %v1286 = vadd.f32 %v821, %v1285
        %1287 = vdwg.mxu0
        %1288 = vmatpush.bf16.msra.mxu0 %v1162
        %1289 = vmatpush.bf16.msra.mxu0 %v1157
        %1290 = vmatpush.bf16.msra.mxu0 %v1152
        %1291 = vmatpush.bf16.msra.mxu0 %v1147
        %1292 = vmatpush.bf16.msra.mxu0 %v1142
        %1293 = vmatpush.bf16.msra.mxu0 %v1137
        %1294 = vmatpush.bf16.msra.mxu0 %v1132
        %1295 = vmatpush.bf16.msra.mxu0 %v1127
        %1296 = vmatmul.bf16.gmra.mxu0 %v721
        %v1297 = vpop.f32.mrf.mxu0
        %v1298 = vadd.f32 %v1284, %v1297
        %v1299 = vpop.f32.mrf.mxu0
        %v1300 = vadd.f32 %v1286, %v1299
        %1301 = vdwg.mxu0
        %1302 = vmatpush.bf16.msra.mxu0 %v1123
        %1303 = vmatpush.bf16.msra.mxu0 %v1118
        %1304 = vmatpush.bf16.msra.mxu0 %v1113
        %1305 = vmatpush.bf16.msra.mxu0 %v1108
        %1306 = vmatpush.bf16.msra.mxu0 %v1103
        %1307 = vmatpush.bf16.msra.mxu0 %v1098
        %1308 = vmatpush.bf16.msra.mxu0 %v1093
        %1309 = vmatpush.bf16.msra.mxu0 %v1088
        %1310 = vmatmul.bf16.gmra.mxu0 %v720
        %v1311 = vpop.f32.mrf.mxu0
        %v1312 = vadd.f32 %v822, %v1311
        %v1313 = vpop.f32.mrf.mxu0
        %v1314 = vadd.f32 %v822, %v1313
        %1315 = vdwg.mxu0
        %1316 = vmatpush.bf16.msra.mxu0 %v1163
        %1317 = vmatpush.bf16.msra.mxu0 %v1158
        %1318 = vmatpush.bf16.msra.mxu0 %v1153
        %1319 = vmatpush.bf16.msra.mxu0 %v1148
        %1320 = vmatpush.bf16.msra.mxu0 %v1143
        %1321 = vmatpush.bf16.msra.mxu0 %v1138
        %1322 = vmatpush.bf16.msra.mxu0 %v1133
        %1323 = vmatpush.bf16.msra.mxu0 %v1128
        %1324 = vmatmul.bf16.gmra.mxu0 %v721
        %v1325 = vpop.f32.mrf.mxu0
        %v1326 = vadd.f32 %v1312, %v1325
        %v1327 = vpop.f32.mrf.mxu0
        %v1328 = vadd.f32 %v1314, %v1327
        %1329 = vdwg.mxu0
        %1330 = vmatpush.bf16.msra.mxu0 %v1124
        %1331 = vmatpush.bf16.msra.mxu0 %v1119
        %1332 = vmatpush.bf16.msra.mxu0 %v1114
        %1333 = vmatpush.bf16.msra.mxu0 %v1109
        %1334 = vmatpush.bf16.msra.mxu0 %v1104
        %1335 = vmatpush.bf16.msra.mxu0 %v1099
        %1336 = vmatpush.bf16.msra.mxu0 %v1094
        %1337 = vmatpush.bf16.msra.mxu0 %v1089
        %1338 = vmatmul.bf16.gmra.mxu0 %v720
        %v1339 = vpop.f32.mrf.mxu0
        %v1340 = vadd.f32 %v823, %v1339
        %v1341 = vpop.f32.mrf.mxu0
        %v1342 = vadd.f32 %v823, %v1341
        %1343 = vdwg.mxu0
        %1344 = vmatpush.bf16.msra.mxu0 %v1164
        %1345 = vmatpush.bf16.msra.mxu0 %v1159
        %1346 = vmatpush.bf16.msra.mxu0 %v1154
        %1347 = vmatpush.bf16.msra.mxu0 %v1149
        %1348 = vmatpush.bf16.msra.mxu0 %v1144
        %1349 = vmatpush.bf16.msra.mxu0 %v1139
        %1350 = vmatpush.bf16.msra.mxu0 %v1134
        %1351 = vmatpush.bf16.msra.mxu0 %v1129
        %1352 = vmatmul.bf16.gmra.mxu0 %v721
        %v1353 = vpop.f32.mrf.mxu0
        %v1354 = vadd.f32 %v1340, %v1353
        %v1355 = vpop.f32.mrf.mxu0
        %v1356 = vadd.f32 %v1342, %v1355
        %1357 = vdwg.mxu0
        %1358 = vmatpush.bf16.msra.mxu0 %v1125
        %1359 = vmatpush.bf16.msra.mxu0 %v1120
        %1360 = vmatpush.bf16.msra.mxu0 %v1115
        %1361 = vmatpush.bf16.msra.mxu0 %v1110
        %1362 = vmatpush.bf16.msra.mxu0 %v1105
        %1363 = vmatpush.bf16.msra.mxu0 %v1100
        %1364 = vmatpush.bf16.msra.mxu0 %v1095
        %1365 = vmatpush.bf16.msra.mxu0 %v1090
        %1366 = vmatmul.bf16.gmra.mxu0 %v720
        %v1367 = vpop.f32.mrf.mxu0
        %v1368 = vadd.f32 %v824, %v1367
        %v1369 = vpop.f32.mrf.mxu0
        %v1370 = vadd.f32 %v824, %v1369
        %1371 = vdwg.mxu0
        %1372 = vmatpush.bf16.msra.mxu0 %v1165
        %1373 = vmatpush.bf16.msra.mxu0 %v1160
        %1374 = vmatpush.bf16.msra.mxu0 %v1155
        %1375 = vmatpush.bf16.msra.mxu0 %v1150
        %1376 = vmatpush.bf16.msra.mxu0 %v1145
        %1377 = vmatpush.bf16.msra.mxu0 %v1140
        %1378 = vmatpush.bf16.msra.mxu0 %v1135
        %1379 = vmatpush.bf16.msra.mxu0 %v1130
        %1380 = vmatmul.bf16.gmra.mxu0 %v721
        %v1381 = vpop.f32.mrf.mxu0
        %v1382 = vadd.f32 %v1368, %v1381
        %v1383 = vpop.f32.mrf.mxu0
        %v1384 = vadd.f32 %v1370, %v1383
        %1385 = vdwg.mxu0
        %v1386 = vpack.c.bf16 %v1298, %v1270
        %v1387 = vpack.c.bf16 %v1354, %v1326
        %v1388 = vpack.c.bf16 %v1382, %v1382
        %v1389 = vpack.c.bf16 %v1300, %v1272
        %v1390 = vpack.c.bf16 %v1356, %v1328
        %v1391 = vpack.c.bf16 %v1384, %v1384
        %v1392 = vunpack.c.l.bf16 %v1386
        %v1393 = vunpack.c.h.bf16 %v1386
        %v1394 = vunpack.c.l.bf16 %v1387
        %v1395 = vunpack.c.h.bf16 %v1387
        %v1396 = vunpack.c.l.bf16 %v1388
        %v1397 = vunpack.c.l.bf16 %v1389
        %v1398 = vunpack.c.h.bf16 %v1389
        %v1399 = vunpack.c.l.bf16 %v1390
        %v1400 = vunpack.c.h.bf16 %v1390
        %v1401 = vunpack.c.l.bf16 %v1391
        %v1402 = vmax.f32 %v1392, 0.0
        %v1403 = vmax.f32 %v1393, 0.0
        %v1404 = vmax.f32 %v1394, 0.0
        %v1405 = vmax.f32 %v1395, 0.0
        %v1406 = vmax.f32 %v1396, 0.0
        %v1407 = vmax.f32 %v1397, 0.0
        %v1408 = vmax.f32 %v1398, 0.0
        %v1409 = vmax.f32 %v1399, 0.0
        %v1410 = vmax.f32 %v1400, 0.0
        %v1411 = vmax.f32 %v1401, 0.0
        %v1412 = vpack.c.bf16 %v1407, %v1402
        %v1413 = vpack.c.bf16 %v1408, %v1403
        %v1414 = vpack.c.bf16 %v1409, %v1404
        %v1415 = vpack.c.bf16 %v1410, %v1405
        %v1416 = vpack.c.bf16 %v1411, %v1406
        %v1417 = vld [vmem:[#allocation11] sm:$0xf]
        %v1418 = vld [vmem:[#allocation11 + $0x4] sm:$0xf]
        %v1419 = vld [vmem:[#allocation11 + $0x8] sm:$0xf]
        %v1420 = vld [vmem:[#allocation11 + $0xc] sm:$0xf]
        %v1421 = vld [vmem:[#allocation11 + $0x10] sm:$0xf]
        %v1422 = vld [vmem:[#allocation11 + $0x14] sm:$0xf]
        %v1423 = vld [vmem:[#allocation11 + $0x18] sm:$0xf]
        %v1424 = vld [vmem:[#allocation11 + $0x1c] sm:$0xf]
        %v1425 = vld [vmem:[#allocation11 + $0x20] sm:$0xf]
        %v1426 = vld [vmem:[#allocation11 + $0x24] sm:$0xf]
        %v1427 = vld [vmem:[#allocation11 + $0x28] sm:$0xf]
        %v1428 = vld [vmem:[#allocation11 + $0x2c] sm:$0xf]
        %v1429 = vld [vmem:[#allocation11 + $0x30] sm:$0xf]
        %v1430 = vld [vmem:[#allocation11 + $0x34] sm:$0xf]
        %v1431 = vld [vmem:[#allocation11 + $0x38] sm:$0xf]
        %v1432 = vld [vmem:[#allocation11 + $0x3c] sm:$0xf]
        %v1433 = vld [vmem:[#allocation11 + $0x40] sm:$0xf]
        %v1434 = vld [vmem:[#allocation11 + $0x44] sm:$0xf]
        %v1435 = vld [vmem:[#allocation11 + $0x48] sm:$0xf]
        %v1436 = vld [vmem:[#allocation11 + $0x4c] sm:$0xf]
        %v1437 = vld [vmem:[#allocation11 + $0x50] sm:$0xf]
        %v1438 = vld [vmem:[#allocation11 + $0x54] sm:$0xf]
        %v1439 = vld [vmem:[#allocation11 + $0x58] sm:$0xf]
        %v1440 = vld [vmem:[#allocation11 + $0x5c] sm:$0xf]
        %v1441 = vld [vmem:[#allocation11 + $0x60] sm:$0xf]
        %v1442 = vld [vmem:[#allocation11 + $0x64] sm:$0xf]
        %v1443 = vld [vmem:[#allocation11 + $0x68] sm:$0xf]
        %v1444 = vld [vmem:[#allocation11 + $0x6c] sm:$0xf]
        %v1445 = vld [vmem:[#allocation11 + $0x70] sm:$0xf]
        %v1446 = vld [vmem:[#allocation11 + $0x74] sm:$0xf]
        %v1447 = vld [vmem:[#allocation11 + $0x78] sm:$0xf]
        %v1448 = vld [vmem:[#allocation11 + $0x7c] sm:$0xf]
        %v1449 = vld [vmem:[#allocation11 + $0x80] sm:$0xf]
        %v1450 = vld [vmem:[#allocation11 + $0x84] sm:$0xf]
        %v1451 = vld [vmem:[#allocation11 + $0x88] sm:$0xf]
        %v1452 = vld [vmem:[#allocation11 + $0x8c] sm:$0xf]
        %v1453 = vld [vmem:[#allocation11 + $0x90] sm:$0xf]
        %v1454 = vld [vmem:[#allocation11 + $0x94] sm:$0xf]
        %v1455 = vld [vmem:[#allocation11 + $0x98] sm:$0xf]
        %v1456 = vld [vmem:[#allocation11 + $0x9c] sm:$0xf]
        %v1457 = vld [vmem:[#allocation11 + $0xa0] sm:$0xf]
        %v1458 = vld [vmem:[#allocation11 + $0xa4] sm:$0xf]
        %v1459 = vld [vmem:[#allocation11 + $0xa8] sm:$0xf]
        %v1460 = vld [vmem:[#allocation11 + $0xac] sm:$0xf]
        %v1461 = vld [vmem:[#allocation11 + $0xb0] sm:$0xf]
        %v1462 = vld [vmem:[#allocation11 + $0xb4] sm:$0xf]
        %v1463 = vld [vmem:[#allocation11 + $0xb8] sm:$0xf]
        %v1464 = vld [vmem:[#allocation11 + $0xbc] sm:$0xf]
        %v1465 = vld [vmem:[#allocation11 + $0xc0] sm:$0xf]
        %v1466 = vld [vmem:[#allocation11 + $0xc4] sm:$0xf]
        %v1467 = vld [vmem:[#allocation11 + $0xc8] sm:$0xf]
        %v1468 = vld [vmem:[#allocation11 + $0xcc] sm:$0xf]
        %v1469 = vld [vmem:[#allocation11 + $0xd0] sm:$0xf]
        %v1470 = vld [vmem:[#allocation11 + $0xd4] sm:$0xf]
        %v1471 = vld [vmem:[#allocation11 + $0xd8] sm:$0xf]
        %v1472 = vld [vmem:[#allocation11 + $0xdc] sm:$0xf]
        %v1473 = vld [vmem:[#allocation11 + $0xe0] sm:$0xf]
        %v1474 = vld [vmem:[#allocation11 + $0xe4] sm:$0xf]
        %v1475 = vld [vmem:[#allocation11 + $0xe8] sm:$0xf]
        %v1476 = vld [vmem:[#allocation11 + $0xec] sm:$0xf]
        %v1477 = vld [vmem:[#allocation11 + $0xf0] sm:$0xf]
        %v1478 = vld [vmem:[#allocation11 + $0xf4] sm:$0xf]
        %v1479 = vld [vmem:[#allocation11 + $0xf8] sm:$0xf]
        %v1480 = vld [vmem:[#allocation11 + $0xfc] sm:$0xf]
        %v1481 = vld [vmem:[#allocation11 + $0x100] sm:$0xf]
        %v1482 = vld [vmem:[#allocation11 + $0x104] sm:$0xf]
        %v1483 = vld [vmem:[#allocation11 + $0x108] sm:$0xf]
        %v1484 = vld [vmem:[#allocation11 + $0x10c] sm:$0xf]
        %v1485 = vld [vmem:[#allocation11 + $0x110] sm:$0xf]
        %v1486 = vld [vmem:[#allocation11 + $0x114] sm:$0xf]
        %v1487 = vld [vmem:[#allocation11 + $0x118] sm:$0xf]
        %v1488 = vld [vmem:[#allocation11 + $0x11c] sm:$0xf]
        %v1489 = vld [vmem:[#allocation11 + $0x120] sm:$0xf]
        %v1490 = vld [vmem:[#allocation11 + $0x124] sm:$0xf]
        %v1491 = vld [vmem:[#allocation11 + $0x128] sm:$0xf]
        %v1492 = vld [vmem:[#allocation11 + $0x12c] sm:$0xf]
        %v1493 = vld [vmem:[#allocation11 + $0x130] sm:$0xf]
        %v1494 = vld [vmem:[#allocation11 + $0x134] sm:$0xf]
        %v1495 = vld [vmem:[#allocation11 + $0x138] sm:$0xf]
        %v1496 = vld [vmem:[#allocation11 + $0x13c] sm:$0xf]
        %v1497 = vld [vmem:[%s6] sm:$0x1]
        %v1499 = vperm.slane %v1497, 0
        %v1581 = vunpack.c.l.b16 %v1417
        %v1582 = vunpack.c.l.b16 %v1418
        %v1583 = vunpack.c.l.b16 %v1419
        %v1584 = vunpack.c.l.b16 %v1420
        %v1585 = vunpack.c.l.b16 %v1421
        %v1586 = vunpack.c.l.b16 %v1422
        %v1587 = vunpack.c.l.b16 %v1423
        %v1588 = vunpack.c.l.b16 %v1424
        %v1589 = vunpack.c.l.b16 %v1425
        %v1590 = vunpack.c.l.b16 %v1426
        %v1591 = vunpack.c.l.b16 %v1427
        %v1592 = vunpack.c.l.b16 %v1428
        %v1593 = vunpack.c.l.b16 %v1429
        %v1594 = vunpack.c.l.b16 %v1430
        %v1595 = vunpack.c.l.b16 %v1431
        %v1596 = vunpack.c.l.b16 %v1432
        %v1597 = vunpack.c.l.b16 %v1433
        %v1598 = vunpack.c.l.b16 %v1434
        %v1599 = vunpack.c.l.b16 %v1435
        %v1600 = vunpack.c.l.b16 %v1436
        %v1601 = vunpack.c.l.b16 %v1437
        %v1602 = vunpack.c.l.b16 %v1438
        %v1603 = vunpack.c.l.b16 %v1439
        %v1604 = vunpack.c.l.b16 %v1440
        %v1605 = vunpack.c.l.b16 %v1441
        %v1606 = vunpack.c.l.b16 %v1442
        %v1607 = vunpack.c.l.b16 %v1443
        %v1608 = vunpack.c.l.b16 %v1444
        %v1609 = vunpack.c.l.b16 %v1445
        %v1610 = vunpack.c.l.b16 %v1446
        %v1611 = vunpack.c.l.b16 %v1447
        %v1612 = vunpack.c.l.b16 %v1448
        %v1613 = vunpack.c.l.b16 %v1449
        %v1614 = vunpack.c.l.b16 %v1450
        %v1615 = vunpack.c.l.b16 %v1451
        %v1616 = vunpack.c.l.b16 %v1452
        %v1617 = vunpack.c.l.b16 %v1453
        %v1618 = vunpack.c.l.b16 %v1454
        %v1619 = vunpack.c.l.b16 %v1455
        %v1620 = vunpack.c.l.b16 %v1456
        %v1621 = vunpack.c.l.b16 %v1457
        %v1622 = vunpack.c.l.b16 %v1458
        %v1623 = vunpack.c.l.b16 %v1459
        %v1624 = vunpack.c.l.b16 %v1460
        %v1625 = vunpack.c.l.b16 %v1461
        %v1626 = vunpack.c.l.b16 %v1462
        %v1627 = vunpack.c.l.b16 %v1463
        %v1628 = vunpack.c.l.b16 %v1464
        %v1629 = vunpack.c.l.b16 %v1465
        %v1630 = vunpack.c.l.b16 %v1466
        %v1631 = vunpack.c.l.b16 %v1467
        %v1632 = vunpack.c.l.b16 %v1468
        %v1633 = vunpack.c.l.b16 %v1469
        %v1634 = vunpack.c.l.b16 %v1470
        %v1635 = vunpack.c.l.b16 %v1471
        %v1636 = vunpack.c.l.b16 %v1472
        %v1637 = vunpack.c.l.b16 %v1473
        %v1638 = vunpack.c.l.b16 %v1474
        %v1639 = vunpack.c.l.b16 %v1475
        %v1640 = vunpack.c.l.b16 %v1476
        %v1641 = vunpack.c.l.b16 %v1477
        %v1642 = vunpack.c.l.b16 %v1478
        %v1643 = vunpack.c.l.b16 %v1479
        %v1644 = vunpack.c.l.b16 %v1480
        %v1645 = vunpack.c.l.b16 %v1481
        %v1646 = vunpack.c.l.b16 %v1482
        %v1647 = vunpack.c.l.b16 %v1483
        %v1648 = vunpack.c.l.b16 %v1484
        %v1649 = vunpack.c.l.b16 %v1485
        %v1650 = vunpack.c.l.b16 %v1486
        %v1651 = vunpack.c.l.b16 %v1487
        %v1652 = vunpack.c.l.b16 %v1488
        %v1653 = vunpack.c.l.b16 %v1489
        %v1654 = vunpack.c.l.b16 %v1490
        %v1655 = vunpack.c.l.b16 %v1491
        %v1656 = vunpack.c.l.b16 %v1492
        %v1657 = vunpack.c.l.b16 %v1493
        %v1658 = vunpack.c.l.b16 %v1494
        %v1659 = vunpack.c.l.b16 %v1495
        %v1660 = vunpack.c.l.b16 %v1496
        %v1661 = vpack.c.b16 %v1582, %v1581
        %v1662 = vpack.c.b16 %v1584, %v1583
        %v1663 = vpack.c.b16 %v1586, %v1585
        %v1664 = vpack.c.b16 %v1588, %v1587
        %v1665 = vpack.c.b16 %v1590, %v1589
        %v1666 = vpack.c.b16 %v1592, %v1591
        %v1667 = vpack.c.b16 %v1594, %v1593
        %v1668 = vpack.c.b16 %v1596, %v1595
        %v1669 = vpack.c.b16 %v1598, %v1597
        %v1670 = vpack.c.b16 %v1600, %v1599
        %v1671 = vpack.c.b16 %v1602, %v1601
        %v1672 = vpack.c.b16 %v1604, %v1603
        %v1673 = vpack.c.b16 %v1606, %v1605
        %v1674 = vpack.c.b16 %v1608, %v1607
        %v1675 = vpack.c.b16 %v1610, %v1609
        %v1676 = vpack.c.b16 %v1612, %v1611
        %v1677 = vpack.c.b16 %v1614, %v1613
        %v1678 = vpack.c.b16 %v1616, %v1615
        %v1679 = vpack.c.b16 %v1618, %v1617
        %v1680 = vpack.c.b16 %v1620, %v1619
        %v1681 = vpack.c.b16 %v1622, %v1621
        %v1682 = vpack.c.b16 %v1624, %v1623
        %v1683 = vpack.c.b16 %v1626, %v1625
        %v1684 = vpack.c.b16 %v1628, %v1627
        %v1685 = vpack.c.b16 %v1630, %v1629
        %v1686 = vpack.c.b16 %v1632, %v1631
        %v1687 = vpack.c.b16 %v1634, %v1633
        %v1688 = vpack.c.b16 %v1636, %v1635
        %v1689 = vpack.c.b16 %v1638, %v1637
        %v1690 = vpack.c.b16 %v1640, %v1639
        %v1691 = vpack.c.b16 %v1642, %v1641
        %v1692 = vpack.c.b16 %v1644, %v1643
        %v1693 = vpack.c.b16 %v1646, %v1645
        %v1694 = vpack.c.b16 %v1648, %v1647
        %v1695 = vpack.c.b16 %v1650, %v1649
        %v1696 = vpack.c.b16 %v1652, %v1651
        %v1697 = vpack.c.b16 %v1654, %v1653
        %v1698 = vpack.c.b16 %v1656, %v1655
        %v1699 = vpack.c.b16 %v1658, %v1657
        %v1700 = vpack.c.b16 %v1660, %v1659
        %1741 = vmatpush.bf16.msra.mxu0 %v1668
        %1742 = vmatpush.bf16.msra.mxu0 %v1667
        %1743 = vmatpush.bf16.msra.mxu0 %v1666
        %1744 = vmatpush.bf16.msra.mxu0 %v1665
        %1745 = vmatpush.bf16.msra.mxu0 %v1664
        %1746 = vmatpush.bf16.msra.mxu0 %v1663
        %1747 = vmatpush.bf16.msra.mxu0 %v1662
        %1748 = vmatpush.bf16.msra.mxu0 %v1661
        %1749 = vmatmul.bf16.gmra.mxu0 %v1412
        %v1750 = vpop.f32.mrf.mxu0
        %v1751 = vadd.f32 %v1499, %v1750
        %v1752 = vpop.f32.mrf.mxu0
        %v1753 = vadd.f32 %v1499, %v1752
        %1754 = vdwg.mxu0
        %1755 = vmatpush.bf16.msra.mxu0 %v1676
        %1756 = vmatpush.bf16.msra.mxu0 %v1675
        %1757 = vmatpush.bf16.msra.mxu0 %v1674
        %1758 = vmatpush.bf16.msra.mxu0 %v1673
        %1759 = vmatpush.bf16.msra.mxu0 %v1672
        %1760 = vmatpush.bf16.msra.mxu0 %v1671
        %1761 = vmatpush.bf16.msra.mxu0 %v1670
        %1762 = vmatpush.bf16.msra.mxu0 %v1669
        %1763 = vmatmul.bf16.gmra.mxu0 %v1413
        %v1764 = vpop.f32.mrf.mxu0
        %v1765 = vadd.f32 %v1751, %v1764
        %v1766 = vpop.f32.mrf.mxu0
        %v1767 = vadd.f32 %v1753, %v1766
        %1768 = vdwg.mxu0
        %1769 = vmatpush.bf16.msra.mxu0 %v1684
        %1770 = vmatpush.bf16.msra.mxu0 %v1683
        %1771 = vmatpush.bf16.msra.mxu0 %v1682
        %1772 = vmatpush.bf16.msra.mxu0 %v1681
        %1773 = vmatpush.bf16.msra.mxu0 %v1680
        %1774 = vmatpush.bf16.msra.mxu0 %v1679
        %1775 = vmatpush.bf16.msra.mxu0 %v1678
        %1776 = vmatpush.bf16.msra.mxu0 %v1677
        %1777 = vmatmul.bf16.gmra.mxu0 %v1414
        %v1778 = vpop.f32.mrf.mxu0
        %v1779 = vadd.f32 %v1765, %v1778
        %v1780 = vpop.f32.mrf.mxu0
        %v1781 = vadd.f32 %v1767, %v1780
        %1782 = vdwg.mxu0
        %1783 = vmatpush.bf16.msra.mxu0 %v1692
        %1784 = vmatpush.bf16.msra.mxu0 %v1691
        %1785 = vmatpush.bf16.msra.mxu0 %v1690
        %1786 = vmatpush.bf16.msra.mxu0 %v1689
        %1787 = vmatpush.bf16.msra.mxu0 %v1688
        %1788 = vmatpush.bf16.msra.mxu0 %v1687
        %1789 = vmatpush.bf16.msra.mxu0 %v1686
        %1790 = vmatpush.bf16.msra.mxu0 %v1685
        %1791 = vmatmul.bf16.gmra.mxu0 %v1415
        %v1792 = vpop.f32.mrf.mxu0
        %v1793 = vadd.f32 %v1779, %v1792
        %v1794 = vpop.f32.mrf.mxu0
        %v1795 = vadd.f32 %v1781, %v1794
        %1796 = vdwg.mxu0
        %1797 = vmatpush.bf16.msra.mxu0 %v1700
        %1798 = vmatpush.bf16.msra.mxu0 %v1699
        %1799 = vmatpush.bf16.msra.mxu0 %v1698
        %1800 = vmatpush.bf16.msra.mxu0 %v1697
        %1801 = vmatpush.bf16.msra.mxu0 %v1696
        %1802 = vmatpush.bf16.msra.mxu0 %v1695
        %1803 = vmatpush.bf16.msra.mxu0 %v1694
        %1804 = vmatpush.bf16.msra.mxu0 %v1693
        %1805 = vmatmul.bf16.gmra.mxu0 %v1416
        %v1806 = vpop.f32.mrf.mxu0
        %v1807 = vadd.f32 %v1793, %v1806
        %v1808 = vpop.f32.mrf.mxu0
        %v1809 = vadd.f32 %v1795, %v1808
        %1810 = vdwg.mxu0
        %v1811 = vpack.c.bf16 %v1807, %v1807
        %v1812 = vpack.c.bf16 %v1809, %v1809
        %v1813 = vunpack.c.l.bf16 %v1811
        %v1814 = vunpack.c.l.bf16 %v1812
        %v1815 = vmax.f32 %v1813, 0.0
        %v1816 = vmax.f32 %v1814, 0.0
        %v1817 = vpack.c.bf16 %v1816, %v1815
        %v1818 = vld [vmem:[#allocation13] sm:$0xf]
        %v1819 = vld [vmem:[#allocation13 + $0x4] sm:$0xf]
        %v1820 = vld [vmem:[#allocation13 + $0x8] sm:$0xf]
        %v1821 = vld [vmem:[#allocation13 + $0xc] sm:$0xf]
        %v1822 = vld [vmem:[#allocation13 + $0x10] sm:$0xf]
        %v1823 = vld [vmem:[#allocation13 + $0x14] sm:$0xf]
        %v1824 = vld [vmem:[#allocation13 + $0x18] sm:$0xf]
        %v1825 = vld [vmem:[#allocation13 + $0x1c] sm:$0xf]
        %v1826 = vld [vmem:[#allocation13 + $0x20] sm:$0xf]
        %v1827 = vld [vmem:[#allocation13 + $0x24] sm:$0xf]
        %v1828 = vld [vmem:[#allocation13 + $0x28] sm:$0xf]
        %v1829 = vld [vmem:[#allocation13 + $0x2c] sm:$0xf]
        %v1830 = vld [vmem:[#allocation13 + $0x30] sm:$0xf]
        %v1831 = vld [vmem:[#allocation13 + $0x34] sm:$0xf]
        %v1832 = vld [vmem:[#allocation13 + $0x38] sm:$0xf]
        %v1833 = vld [vmem:[#allocation13 + $0x3c] sm:$0xf]
        %v1834 = vld [vmem:[%s8] sm:$0x1]
        %v1836 = vperm.slane %v1834, 0
        %v1854 = vunpack.c.l.b16 %v1818
        %v1855 = vunpack.c.l.b16 %v1819
        %v1856 = vunpack.c.l.b16 %v1820
        %v1857 = vunpack.c.l.b16 %v1821
        %v1858 = vunpack.c.l.b16 %v1822
        %v1859 = vunpack.c.l.b16 %v1823
        %v1860 = vunpack.c.l.b16 %v1824
        %v1861 = vunpack.c.l.b16 %v1825
        %v1862 = vunpack.c.l.b16 %v1826
        %v1863 = vunpack.c.l.b16 %v1827
        %v1864 = vunpack.c.l.b16 %v1828
        %v1865 = vunpack.c.l.b16 %v1829
        %v1866 = vunpack.c.l.b16 %v1830
        %v1867 = vunpack.c.l.b16 %v1831
        %v1868 = vunpack.c.l.b16 %v1832
        %v1869 = vunpack.c.l.b16 %v1833
        %v1870 = vpack.c.b16 %v1855, %v1854
        %v1871 = vpack.c.b16 %v1857, %v1856
        %v1872 = vpack.c.b16 %v1859, %v1858
        %v1873 = vpack.c.b16 %v1861, %v1860
        %v1874 = vpack.c.b16 %v1863, %v1862
        %v1875 = vpack.c.b16 %v1865, %v1864
        %v1876 = vpack.c.b16 %v1867, %v1866
        %v1877 = vpack.c.b16 %v1869, %v1868
        %1886 = vmatpush.bf16.msra.mxu0 %v1877
        %1887 = vmatpush.bf16.msra.mxu0 %v1876
        %1888 = vmatpush.bf16.msra.mxu0 %v1875
        %1889 = vmatpush.bf16.msra.mxu0 %v1874
        %1890 = vmatpush.bf16.msra.mxu0 %v1873
        %1891 = vmatpush.bf16.msra.mxu0 %v1872
        %1892 = vmatpush.bf16.msra.mxu0 %v1871
        %1893 = vmatpush.bf16.msra.mxu0 %v1870
        %1894 = vmatmul.bf16.gmra.mxu0 %v1817
        %v1895 = vpop.f32.mrf.mxu0
        %v1896 = vadd.f32 %v1836, %v1895
        %v1897 = vpop.f32.mrf.mxu0
        %v1898 = vadd.f32 %v1836, %v1897
        %1899 = vdwg.mxu0
        %1900 = vst [vmem:[%s456] sm:$0xff] %v1896
        %1901 = vst [vmem:[%s456 + $0x8] sm:$0xff] %v1898
        %s1902 = sand.u32 %s231, 1
        %s1903 = scalar_lea.sflag [#allocation4], %s1902
        %s1904 = sand.u32 %s231, 1
        %s1905 = smul.addr %s1904, 16
        %s1906 = scalar_lea.vmem [#allocation14], %s1905
        // Predicated region
        $region85: #{tpu_custom_call.1} parent=55 // pred_check
          %p1907 = pneg %p241
        $region86: #{tpu_custom_call.1} parent=55 // pred_check_branch
          %1909 = sbr.rel (%p1907) target = $region88
        $region87: #{tpu_custom_call.1} parent=55 // pred_region
          %s1910 = smul.u32 2, %s29
          %s1911 = ssub.s32 7, %s1910
          %p1912 = scmp.lt.s32.totalorder %s1911, 2
          %s1913 = scalar_select %p1912, %s1911, 2
          %s1914 = smul.u32 8, %s1913
          %s1915 = ssub.s32 16, %s1914
          %s1916 = sshll.u32 %s1915, 4
          %1917 = vsyncadd %s1903, %s1916
          %p1918 = scmp.ne.s32.totalorder 0, %s1914
          %s1919 = smul.addr %s1910, 8
          %s1920 = scalar_lea.hbm %s9, %s1919
          %s1921 = smul.u32 8, %s1913
          %s1922 = sshll.u32 %s1906, 4
          %s1923 = int_to_ptr.vmem [resolvable:$true] %s1922
          %s1924 = sshll.u32 %s1920, 4
          %s1925 = int_to_ptr.hbm [resolvable:$true] %s1924
          %s1926 = sshll.u32 %s1921, 4
          %1930 = dma.vmem_to_hbm [thread:$0]  (%p1918), %s1923, %s1926, %s1925, %s1903, 128, 128, 8
        $region88: #{tpu_custom_call.1} parent=55 // pred_fallthru
          _
      $region56: #{tpu_custom_call.1} parent=5 // pred_fallthru
        _
      %p1931 = scmp.le.s32.totalorder 2, %s24
      // Predicated region
      $region89: #{tpu_custom_call.1} parent=5 // pred_check
        %p1932 = pneg %p1931
      $region90: #{tpu_custom_call.1} parent=5 // pred_check_branch
        %1934 = sbr.rel (%p1932) target = $region92
      $region91: #{tpu_custom_call.1} parent=5 // pred_region
        %s1935 = ssub.s32 %s24, 2
        // Predicated region
        $region93: #{tpu_custom_call.1} parent=91 // pred_check
          %p1936 = pneg %p247
        $region94: #{tpu_custom_call.1} parent=91 // pred_check_branch
          %1938 = sbr.rel (%p1936) target = $region96
        $region95: #{tpu_custom_call.1} parent=91 // pred_region
          %s1939 = sand.u32 %s232, 1
          %s1940 = scalar_lea.sflag [#allocation4], %s1939
          %s1941 = sand.u32 %s232, 1
          %s1942 = smul.addr %s1941, 16
          %s1943 = scalar_lea.vmem [#allocation14], %s1942
          %1945 = dma.done %s1940, 256
        $region96: #{tpu_custom_call.1} parent=91 // pred_fallthru
          _
      $region92: #{tpu_custom_call.1} parent=5 // pred_fallthru
        _
    $region6: #{tpu_custom_call.1} parent=1 // loop_footer
      %s28 = sadd.s32 1, %s24
    $region7: #{tpu_custom_call.1} parent=1 // loop_footer_branch
      %23 = sbr.rel target = $region3
    $region8: #{tpu_custom_call.1} parent=1 // loop_exit
      _
    %1946 = vsyncpa [#allocation3], 1
    %s1947 = scalar_lea.sflag [#allocation3], 1
    %1948 = vsyncpa %s1947, 1
    %1949 = vsyncpa [#allocation6], 1
    %1950 = vsyncpa [#allocation9], 1
    %1951 = vsyncpa [#allocation12], 1
    %1952 = vsyncpa [#allocation4], 1
    %s1953 = scalar_lea.sflag [#allocation4], 1
    %1954 = vsyncpa %s1953, 1

</llo_original>
